<compile_context>
chip_gen: v6e
topology: v6e:2x2x1
jax: 0.10.0
libtpu: 0.0.40
codegen_flags: <defaults>
</compile_context>

<pallas_src>
import jax
import jax.numpy as jnp
from jax import lax
from jax.experimental import pallas as pl
from jax.experimental.pallas import tpu as pltpu

IN_DIM = 10          # NUMBER_OF_LINES
FC1_DIMS = 1024
FC2_DIMS = 512
N_ACTIONS = 3
N_HEAD = N_ACTIONS + 1   # fused head: columns [0:3] = advantage, [3:4] = value


def _mlp_heads(x, w1, b1, w2, b2, wh, bh):
    """Shared body: bf16 MXU matmuls with f32 accumulation; bias/ReLU in f32."""
    h1 = jnp.dot(x.astype(jnp.bfloat16), w1, preferred_element_type=jnp.float32) + b1
    h1 = jnp.maximum(h1, 0.0)                                             # (B, 1024) f32
    h2 = jnp.dot(h1.astype(jnp.bfloat16), w2, preferred_element_type=jnp.float32) + b2
    h2 = jnp.maximum(h2, 0.0)                                             # (B, 512) f32
    return jnp.dot(h2.astype(jnp.bfloat16), wh, preferred_element_type=jnp.float32) + bh  # (B, 4)


def _dueling_single_kernel(x_ref, w1_ref, b1_ref, w2_ref, b2_ref, wh_ref, bh_ref, out_ref):
    """Whole batch in one grid point: fused heads + global adv.mean() in-kernel."""
    y = _mlp_heads(x_ref[...], w1_ref[...], b1_ref[...], w2_ref[...], b2_ref[...],
                   wh_ref[...], bh_ref[...])                              # (B, 4) f32
    b = y.shape[0]
    # Split adv / val with lane-index masks (avoids an unaligned lane slice at offset 3).
    lane = lax.broadcasted_iota(jnp.int32, y.shape, 1)
    adv4 = jnp.where(lane < N_ACTIONS, y, 0.0)                            # adv in lanes 0..2
    val = jnp.sum(jnp.where(lane == N_ACTIONS, y, 0.0), axis=1, keepdims=True)  # (B, 1)
    adv_mean = jnp.sum(adv4) * (1.0 / (b * N_ACTIONS))                    # global scalar mean
    out4 = adv4 + val - adv_mean                                          # (B, 4); lane 3 unused
    out_ref[...] = out4[:, :N_ACTIONS].astype(out_ref.dtype)


def _dueling_heads_kernel(x_ref, w1_ref, b1_ref, w2_ref, b2_ref, wh_ref, bh_ref, y_ref):
    """Batch-tiled body: per-tile fused head outputs only (global mean finalized in wrapper)."""
    y_ref[...] = _mlp_heads(x_ref[...], w1_ref[...], b1_ref[...], w2_ref[...], b2_ref[...],
                            wh_ref[...], bh_ref[...]).astype(y_ref.dtype)


def _cost_estimate(batch):
    flops = 2 * batch * (IN_DIM * FC1_DIMS + FC1_DIMS * FC2_DIMS + FC2_DIMS * N_HEAD)
    weight_bytes = 2 * (IN_DIM * FC1_DIMS + FC1_DIMS * FC2_DIMS + FC2_DIMS * N_HEAD)  # bf16
    bias_bytes = 4 * (FC1_DIMS + FC2_DIMS + N_HEAD)
    io_bytes = 4 * batch * (IN_DIM + N_HEAD)
    return pl.CostEstimate(flops=flops, transcendentals=0,
                           bytes_accessed=weight_bytes + bias_bytes + io_bytes)


def dueling_forward(x, params, *, tile_b=512, max_single_tile_b=1024):
    """x: (B, IN_DIM) float32. params from init_params(). Returns (B, N_ACTIONS) float32."""
    B = x.shape[0]
    x = x.astype(jnp.float32)
    # bf16 weights (no-op if already bf16), f32 biases.
    w1 = params["w1"].astype(jnp.bfloat16)
    w2 = params["w2"].astype(jnp.bfloat16)
    wh = params["wh"].astype(jnp.bfloat16)
    b1 = params["b1"].astype(jnp.float32)
    b2 = params["b2"].astype(jnp.float32)
    bh = params["bh"].astype(jnp.float32)
    weight_args = (w1, b1, w2, b2, wh, bh)

    if B <= max_single_tile_b:
        # Single grid point: the full forward, including the global adv mean, in one kernel.
        full = lambda a: pl.BlockSpec(a.shape, lambda: (0,) * a.ndim)
        return pl.pallas_call(
            _dueling_single_kernel,
            out_shape=jax.ShapeDtypeStruct((B, N_ACTIONS), jnp.float32),
            grid=(),
            in_specs=[full(a) for a in (x,) + weight_args],
            out_specs=pl.BlockSpec((B, N_ACTIONS), lambda: (0, 0)),
            cost_estimate=_cost_estimate(B),
        )(x, *weight_args)

    # Batch-tiled path: weights stay VMEM-resident (constant index_map), x / y tiles pipeline,
    # batch axis is "parallel" (uses both TensorCores on v7x).
    assert tile_b % 8 == 0, "tile_b must be a multiple of 8 (sublane tiling)"
    num_tiles = pl.cdiv(B, tile_b)
    b_pad = num_tiles * tile_b
    if b_pad != B:
        x = jnp.pad(x, ((0, b_pad - B), (0, 0)))

    const_spec = lambda a: pl.BlockSpec(a.shape, lambda i: (0, 0))
    y = pl.pallas_call(
        _dueling_heads_kernel,
        out_shape=jax.ShapeDtypeStruct((b_pad, N_HEAD), jnp.float32),
        grid=(num_tiles,),
        in_specs=[pl.BlockSpec((tile_b, IN_DIM), lambda i: (i, 0))]
                 + [const_spec(a) for a in weight_args],
        out_specs=pl.BlockSpec((tile_b, N_HEAD), lambda i: (i, 0)),
        compiler_params=pltpu.CompilerParams(dimension_semantics=("parallel",)),
        cost_estimate=_cost_estimate(b_pad),
    )(x, *weight_args)

    # Global adv.mean() couples all batch tiles -> finalize with a trivial fused XLA op.
    adv = y[:B, :N_ACTIONS]
    val = y[:B, N_ACTIONS:]
    return val + adv - jnp.mean(adv)


def init_params(key):
    """torch.nn.Linear-style init (uniform +-1/sqrt(fan_in)); weights stored as
    (in_features, out_features); advantage/value heads fused into wh/bh; weights in bf16."""
    def linear(k, fan_in, fan_out):
        kw, kb = jax.random.split(k)
        bound = float(fan_in) ** -0.5
        w = jax.random.uniform(kw, (fan_in, fan_out), jnp.float32, -bound, bound)
        b = jax.random.uniform(kb, (1, fan_out), jnp.float32, -bound, bound)
        return w, b

    k1, k2, k3, k4 = jax.random.split(key, 4)
    w1, b1 = linear(k1, IN_DIM, FC1_DIMS)
    w2, b2 = linear(k2, FC1_DIMS, FC2_DIMS)
    wa, ba = linear(k3, FC2_DIMS, N_ACTIONS)
    wv, bv = linear(k4, FC2_DIMS, 1)
    wh = jnp.concatenate([wa, wv], axis=1)   # (512, 4): adv cols 0..2, value col 3
    bh = jnp.concatenate([ba, bv], axis=1)   # (1, 4)
    return dict(w1=w1.astype(jnp.bfloat16), b1=b1,
                w2=w2.astype(jnp.bfloat16), b2=b2,
                wh=wh.astype(jnp.bfloat16), bh=bh)


def reference_forward(x, p):
    """Same-math JAX reference (bf16 matmul operands, f32 accumulation)."""
    h1 = jnp.maximum(jnp.dot(x.astype(jnp.bfloat16), p["w1"],
                             preferred_element_type=jnp.float32) + p["b1"], 0.0)
    h2 = jnp.maximum(jnp.dot(h1.astype(jnp.bfloat16), p["w2"],
                             preferred_element_type=jnp.float32) + p["b2"], 0.0)
    y = jnp.dot(h2.astype(jnp.bfloat16), p["wh"],
                preferred_element_type=jnp.float32) + p["bh"]
    adv, val = y[:, :N_ACTIONS], y[:, N_ACTIONS:]
    return val + adv - jnp.mean(adv)


if __name__ == "__main__":
    key = jax.random.PRNGKey(0)
    kx1, kx2, kp = jax.random.split(key, 3)
    params = init_params(kp)

    # Path 1: small batch -> single fused kernel (global mean in-kernel).
    b_small = 8
    x_small = jax.random.normal(kx1, (b_small, IN_DIM), jnp.float32)
    out_small = jax.block_until_ready(dueling_forward(x_small, params))
    ref_small = reference_forward(x_small, params)
    assert out_small.shape == (b_small, N_ACTIONS)
    assert jnp.allclose(out_small, ref_small, atol=1e-2, rtol=1e-2), "single-tile path mismatch"

    # Path 2: batch-tiled "parallel" grid (forced with a tiny tile so shapes stay small);
    # exercises VMEM-resident weights, pipelined x/y tiles, and batch padding (40 -> 48).
    b_big = 40
    x_big = jax.random.normal(kx2, (b_big, IN_DIM), jnp.float32)
    out_big = jax.block_until_ready(
        dueling_forward(x_big, params, tile_b=16, max_single_tile_b=0))
    ref_big = reference_forward(x_big, params)
    assert out_big.shape == (b_big, N_ACTIONS)
    assert jnp.allclose(out_big, ref_big, atol=1e-2, rtol=1e-2), "tiled path mismatch"

    print("KERNEL_OK")
</pallas_src>

<mosaic_0001>
module attributes {stable_mosaic.version = 11 : i64} {
  func.func @_dueling_single_kernel(%arg0: memref<8x10xf32, #tpu.memory_space<vmem>>, %arg1: memref<10x1024xbf16, #tpu.memory_space<vmem>>, %arg2: memref<1x1024xf32, #tpu.memory_space<vmem>>, %arg3: memref<1024x512xbf16, #tpu.memory_space<vmem>>, %arg4: memref<1x512xf32, #tpu.memory_space<vmem>>, %arg5: memref<512x4xbf16, #tpu.memory_space<vmem>>, %arg6: memref<1x4xf32, #tpu.memory_space<vmem>>, %arg7: memref<8x3xf32, #tpu.memory_space<vmem>>) attributes {dimension_semantics = [], scalar_prefetch = 0 : i64, scratch_operands = 0 : i64, tpu.core_type = #tpu.core_type<tc>} {
    %c0 = arith.constant 0 : index
    %c0_0 = arith.constant 0 : index
    %0 = vector.load %arg0[%c0, %c0_0] : memref<8x10xf32, #tpu.memory_space<vmem>>, vector<8x10xf32>
    %c0_1 = arith.constant 0 : index
    %c0_2 = arith.constant 0 : index
    %1 = vector.load %arg1[%c0_1, %c0_2] : memref<10x1024xbf16, #tpu.memory_space<vmem>>, vector<10x1024xbf16>
    %c0_3 = arith.constant 0 : index
    %c0_4 = arith.constant 0 : index
    %2 = vector.load %arg2[%c0_3, %c0_4] : memref<1x1024xf32, #tpu.memory_space<vmem>>, vector<1x1024xf32>
    %c0_5 = arith.constant 0 : index
    %c0_6 = arith.constant 0 : index
    %3 = vector.load %arg3[%c0_5, %c0_6] : memref<1024x512xbf16, #tpu.memory_space<vmem>>, vector<1024x512xbf16>
    %c0_7 = arith.constant 0 : index
    %c0_8 = arith.constant 0 : index
    %4 = vector.load %arg4[%c0_7, %c0_8] : memref<1x512xf32, #tpu.memory_space<vmem>>, vector<1x512xf32>
    %c0_9 = arith.constant 0 : index
    %c0_10 = arith.constant 0 : index
    %5 = vector.load %arg5[%c0_9, %c0_10] : memref<512x4xbf16, #tpu.memory_space<vmem>>, vector<512x4xbf16>
    %c0_11 = arith.constant 0 : index
    %c0_12 = arith.constant 0 : index
    %6 = vector.load %arg6[%c0_11, %c0_12] : memref<1x4xf32, #tpu.memory_space<vmem>>, vector<1x4xf32>
    %7 = arith.truncf %0 : vector<8x10xf32> to vector<8x10xbf16>
    %cst = arith.constant dense<0.000000e+00> : vector<8x1024xf32>
    %8 = tpu.matmul %7, %1, %cst {dimension_numbers = #tpu.dot_dimension_numbers<[1], [0], [0], [1], [0, 0, 1, 1], [], []>} : vector<8x10xbf16>, vector<10x1024xbf16>, vector<8x1024xf32> -> vector<8x1024xf32>
    %9 = vector.broadcast %2 : vector<1x1024xf32> to vector<8x1024xf32>
    %10 = arith.addf %8, %9 : vector<8x1024xf32>
    %cst_13 = arith.constant 0.000000e+00 : f32
    %11 = vector.broadcast %cst_13 : f32 to vector<8x1024xf32>
    %12 = arith.maximumf %10, %11 : vector<8x1024xf32>
    %13 = arith.truncf %12 : vector<8x1024xf32> to vector<8x1024xbf16>
    %cst_14 = arith.constant dense<0.000000e+00> : vector<8x512xf32>
    %14 = tpu.matmul %13, %3, %cst_14 {dimension_numbers = #tpu.dot_dimension_numbers<[1], [0], [0], [1], [0, 0, 1, 1], [], []>} : vector<8x1024xbf16>, vector<1024x512xbf16>, vector<8x512xf32> -> vector<8x512xf32>
    %15 = vector.broadcast %4 : vector<1x512xf32> to vector<8x512xf32>
    %16 = arith.addf %14, %15 : vector<8x512xf32>
    %cst_15 = arith.constant 0.000000e+00 : f32
    %17 = vector.broadcast %cst_15 : f32 to vector<8x512xf32>
    %18 = arith.maximumf %16, %17 : vector<8x512xf32>
    %19 = arith.truncf %18 : vector<8x512xf32> to vector<8x512xbf16>
    %cst_16 = arith.constant dense<0.000000e+00> : vector<8x4xf32>
    %20 = tpu.matmul %19, %5, %cst_16 {dimension_numbers = #tpu.dot_dimension_numbers<[1], [0], [0], [1], [0, 0, 1, 1], [], []>} : vector<8x512xbf16>, vector<512x4xbf16>, vector<8x4xf32> -> vector<8x4xf32>
    %21 = vector.broadcast %6 : vector<1x4xf32> to vector<8x4xf32>
    %22 = arith.addf %20, %21 : vector<8x4xf32>
    %23 = tpu.iota {dimensions = array<i32: 1>} : vector<8x4xi32>
    %c3_i32 = arith.constant 3 : i32
    %24 = vector.broadcast %c3_i32 : i32 to vector<8x4xi32>
    %25 = arith.cmpi slt, %23, %24 : vector<8x4xi32>
    %cst_17 = arith.constant 0.000000e+00 : f32
    %26 = vector.broadcast %cst_17 : f32 to vector<8x4xf32>
    %27 = arith.select %25, %22, %26 : vector<8x4xi1>, vector<8x4xf32>
    %c3_i32_18 = arith.constant 3 : i32
    %28 = vector.broadcast %c3_i32_18 : i32 to vector<8x4xi32>
    %29 = arith.cmpi eq, %23, %28 : vector<8x4xi32>
    %cst_19 = arith.constant 0.000000e+00 : f32
    %30 = vector.broadcast %cst_19 : f32 to vector<8x4xf32>
    %31 = arith.select %29, %22, %30 : vector<8x4xi1>, vector<8x4xf32>
    %cst_20 = arith.constant dense<0.000000e+00> : vector<8xf32>
    %32 = vector.multi_reduction <add>, %31, %cst_20 [1] : vector<8x4xf32> to vector<8xf32>
    %33 = vector.shape_cast %32 : vector<8xf32> to vector<8x1xf32>
    %34 = vector.shape_cast %27 : vector<8x4xf32> to vector<1x8x4xf32>
    %cst_21 = arith.constant dense<0.000000e+00> : vector<1xf32>
    %35 = vector.multi_reduction <add>, %34, %cst_21 [1, 2] : vector<1x8x4xf32> to vector<1xf32>
    %36 = vector.shape_cast %35 : vector<1xf32> to vector<1x1x1xf32>
    %37 = vector.extract %36[0, 0, 0] : f32 from vector<1x1x1xf32>
    %cst_22 = arith.constant 0.0416666679 : f32
    %38 = arith.mulf %37, %cst_22 : f32
    %39 = vector.broadcast %33 : vector<8x1xf32> to vector<8x4xf32>
    %40 = arith.addf %27, %39 : vector<8x4xf32>
    %41 = vector.broadcast %38 : f32 to vector<8x4xf32>
    %42 = arith.subf %40, %41 : vector<8x4xf32>
    %43 = vector.extract_strided_slice %42 {offsets = [0, 0], sizes = [8, 3], strides = [1, 1]} : vector<8x4xf32> to vector<8x3xf32>
    %c0_23 = arith.constant 0 : index
    %c0_24 = arith.constant 0 : index
    %44 = vector.load %arg7[%c0_23, %c0_24] : memref<8x3xf32, #tpu.memory_space<vmem>>, vector<8x3xf32>
    tpu.vector_store %arg7[%c0_23, %c0_24], %43 {strides = array<i32>} : memref<8x3xf32, #tpu.memory_space<vmem>>, vector<8x3xf32>,
    return
  }
}

</mosaic_0001>

<llo_original>
// kernel: tpu_custom_call.1
$region0: #{tpu_custom_call.1}
  #allocation0 [shape = 'u32[]', space=smem, size = 0x4, offset = 0x4, fixed_abs, tag = 'smem constant byte address 0x4 - core index']
  #allocation1 [shape = 'u32[144,128]{1,0:T(1,128)}', space=vmem, size = 0x12000, scoped, tag = 'internal scratch']
  %s0 = inlined_call_operand.vmem [shape: f32[8,10], index: 0, kind: input, shape index: {}]
  %s1 = inlined_call_operand.vmem [shape: bf16[10,1024], index: 1, kind: input, shape index: {}]
  %s2 = inlined_call_operand.vmem [shape: f32[1,1024], index: 2, kind: input, shape index: {}]
  %s3 = inlined_call_operand.hbm [shape: bf16[1024,512], index: 3, kind: input, shape index: {}]
  %s4 = inlined_call_operand.vmem [shape: f32[1,512], index: 4, kind: input, shape index: {}]
  %s5 = inlined_call_operand.vmem [shape: bf16[512,4], index: 5, kind: input, shape index: {}]
  %s6 = inlined_call_operand.vmem [shape: f32[1,4], index: 6, kind: input, shape index: {}]
  %s7 = inlined_call_operand.vmem [shape: f32[8,3], index: 7, kind: output, shape index: {}]
  %s8 = sld [smem:[#allocation0]]
  $region42: #{tpu_custom_call.1} parent=0
    _
  %s10 = ssub.s32 1, %s8
  %s11 = scalar_select 0, %s10, %s8
  $region1: #{tpu_custom_call.1} parent=0
    #allocation2 [shape = 'u8[1048576]{0}', space=vmem, size = 0x100000, scoped, tag = 'input window, operand 3, single buffered']
    #allocation3 [shape = 's32[1]{0}', space=sflag, size = 0x4, scoped, tag = 'scoped memory for tpu_custom_call.1']
    %12 = vsyncpa [#allocation3], 0
    // Predicated region
    $region2: #{tpu_custom_call.1} parent=1 // pred_check
      _
    $region3: #{tpu_custom_call.1} parent=1 // pred_check_branch
      %14 = sbr.rel (0) target = $region5
    $region4: #{tpu_custom_call.1} parent=1 // pred_region
      _
    $region5: #{tpu_custom_call.1} parent=1 // pred_fallthru
      _
    // Predicated region
    $region6: #{tpu_custom_call.1} parent=1 // pred_check
      _
    $region7: #{tpu_custom_call.1} parent=1 // pred_check_branch
      %16 = sbr.rel (0) target = $region9
    $region8: #{tpu_custom_call.1} parent=1 // pred_region
      _
    $region9: #{tpu_custom_call.1} parent=1 // pred_fallthru
      _
    // Predicated region
    $region10: #{tpu_custom_call.1} parent=1 // pred_check
      _
    $region11: #{tpu_custom_call.1} parent=1 // pred_check_branch
      %18 = sbr.rel (0) target = $region13
    $region12: #{tpu_custom_call.1} parent=1 // pred_region
      _
    $region13: #{tpu_custom_call.1} parent=1 // pred_fallthru
      _
    // Predicated region
    $region14: #{tpu_custom_call.1} parent=1 // pred_check
      _
    $region15: #{tpu_custom_call.1} parent=1 // pred_check_branch
      %20 = sbr.rel (0) target = $region17
    $region16: #{tpu_custom_call.1} parent=1 // pred_region
      %s22 = ssub.s32 32768, 32768
      %23 = vsyncadd [#allocation3], %s22
      %s24 = sshll.u32 [#allocation2], 4
      %s25 = int_to_ptr.vmem [resolvable:$true] %s24
      %30 = dma.hbm_to_vmem [thread:$0]  %s3, 32768, %s25, [#allocation3], 256, 256, 16
    $region17: #{tpu_custom_call.1} parent=1 // pred_fallthru
      _
    // Predicated region
    $region18: #{tpu_custom_call.1} parent=1 // pred_check
      _
    $region19: #{tpu_custom_call.1} parent=1 // pred_check_branch
      %32 = sbr.rel (0) target = $region21
    $region20: #{tpu_custom_call.1} parent=1 // pred_region
      _
    $region21: #{tpu_custom_call.1} parent=1 // pred_fallthru
      _
    // Predicated region
    $region22: #{tpu_custom_call.1} parent=1 // pred_check
      _
    $region23: #{tpu_custom_call.1} parent=1 // pred_check_branch
      %34 = sbr.rel (0) target = $region25
    $region24: #{tpu_custom_call.1} parent=1 // pred_region
      _
    $region25: #{tpu_custom_call.1} parent=1 // pred_fallthru
      _
    // Predicated region
    $region26: #{tpu_custom_call.1} parent=1 // pred_check
      _
    $region27: #{tpu_custom_call.1} parent=1 // pred_check_branch
      %36 = sbr.rel (0) target = $region29
    $region28: #{tpu_custom_call.1} parent=1 // pred_region
      _
    $region29: #{tpu_custom_call.1} parent=1 // pred_fallthru
      _
    // Predicated region
    $region30: #{tpu_custom_call.1} parent=1 // pred_check
      _
    $region31: #{tpu_custom_call.1} parent=1 // pred_check_branch
      %38 = sbr.rel (0) target = $region33
    $region32: #{tpu_custom_call.1} parent=1 // pred_region
      %39 = dma.done [#allocation3], 32768
    $region33: #{tpu_custom_call.1} parent=1 // pred_fallthru
      _
    %v41 = vld [vmem:[%s0] sm:$0xff]
    %v42 = vld [vmem:[%s1] sm:$0xff]
    %v43 = vld [vmem:[%s1 + $0x8] sm:$0xff]
    %v44 = vld [vmem:[%s1 + $0x10] sm:$0xff]
    %v45 = vld [vmem:[%s1 + $0x18] sm:$0xff]
    %v46 = vld [vmem:[%s1 + $0x20] sm:$0x11]
    %v47 = vld [vmem:[%s1 + $0x28] sm:$0x11]
    %v48 = vld [vmem:[%s1 + $0x30] sm:$0x11]
    %v49 = vld [vmem:[%s1 + $0x38] sm:$0x11]
    %v50 = vld [vmem:[%s2] sm:$0xff]
    %v51 = vld [vmem:[#allocation2] sm:$0xff]
    %v52 = vld [vmem:[#allocation2 + $0x8] sm:$0xff]
    %v53 = vld [vmem:[#allocation2 + $0x10] sm:$0xff]
    %v54 = vld [vmem:[#allocation2 + $0x18] sm:$0xff]
    %v55 = vld [vmem:[#allocation2 + $0x20] sm:$0xff]
    %v56 = vld [vmem:[#allocation2 + $0x28] sm:$0xff]
    %v57 = vld [vmem:[#allocation2 + $0x30] sm:$0xff]
    %v58 = vld [vmem:[#allocation2 + $0x38] sm:$0xff]
    %v59 = vld [vmem:[#allocation2 + $0x40] sm:$0xff]
    %v60 = vld [vmem:[#allocation2 + $0x48] sm:$0xff]
    %v61 = vld [vmem:[#allocation2 + $0x50] sm:$0xff]
    %v62 = vld [vmem:[#allocation2 + $0x58] sm:$0xff]
    %v63 = vld [vmem:[#allocation2 + $0x60] sm:$0xff]
    %v64 = vld [vmem:[#allocation2 + $0x68] sm:$0xff]
    %v65 = vld [vmem:[#allocation2 + $0x70] sm:$0xff]
    %v66 = vld [vmem:[#allocation2 + $0x78] sm:$0xff]
    %v67 = vld [vmem:[#allocation2 + $0x80] sm:$0xff]
    %v68 = vld [vmem:[#allocation2 + $0x88] sm:$0xff]
    %v69 = vld [vmem:[#allocation2 + $0x90] sm:$0xff]
    %v70 = vld [vmem:[#allocation2 + $0x98] sm:$0xff]
    %v71 = vld [vmem:[#allocation2 + $0xa0] sm:$0xff]
    %v72 = vld [vmem:[#allocation2 + $0xa8] sm:$0xff]
    %v73 = vld [vmem:[#allocation2 + $0xb0] sm:$0xff]
    %v74 = vld [vmem:[#allocation2 + $0xb8] sm:$0xff]
    %v75 = vld [vmem:[#allocation2 + $0xc0] sm:$0xff]
    %v76 = vld [vmem:[#allocation2 + $0xc8] sm:$0xff]
    %v77 = vld [vmem:[#allocation2 + $0xd0] sm:$0xff]
    %v78 = vld [vmem:[#allocation2 + $0xd8] sm:$0xff]
    %v79 = vld [vmem:[#allocation2 + $0xe0] sm:$0xff]
    %v80 = vld [vmem:[#allocation2 + $0xe8] sm:$0xff]
    %v81 = vld [vmem:[#allocation2 + $0xf0] sm:$0xff]
    %v82 = vld [vmem:[#allocation2 + $0xf8] sm:$0xff]
    %v83 = vld [vmem:[#allocation2 + $0x100] sm:$0xff]
    %v84 = vld [vmem:[#allocation2 + $0x108] sm:$0xff]
    %v85 = vld [vmem:[#allocation2 + $0x110] sm:$0xff]
    %v86 = vld [vmem:[#allocation2 + $0x118] sm:$0xff]
    %v87 = vld [vmem:[#allocation2 + $0x120] sm:$0xff]
    %v88 = vld [vmem:[#allocation2 + $0x128] sm:$0xff]
    %v89 = vld [vmem:[#allocation2 + $0x130] sm:$0xff]
    %v90 = vld [vmem:[#allocation2 + $0x138] sm:$0xff]
    %v91 = vld [vmem:[#allocation2 + $0x140] sm:$0xff]
    %v92 = vld [vmem:[#allocation2 + $0x148] sm:$0xff]
    %v93 = vld [vmem:[#allocation2 + $0x150] sm:$0xff]
    %v94 = vld [vmem:[#allocation2 + $0x158] sm:$0xff]
    %v95 = vld [vmem:[#allocation2 + $0x160] sm:$0xff]
    %v96 = vld [vmem:[#allocation2 + $0x168] sm:$0xff]
    %v97 = vld [vmem:[#allocation2 + $0x170] sm:$0xff]
    %v98 = vld [vmem:[#allocation2 + $0x178] sm:$0xff]
    %v99 = vld [vmem:[#allocation2 + $0x180] sm:$0xff]
    %v100 = vld [vmem:[#allocation2 + $0x188] sm:$0xff]
    %v101 = vld [vmem:[#allocation2 + $0x190] sm:$0xff]
    %v102 = vld [vmem:[#allocation2 + $0x198] sm:$0xff]
    %v103 = vld [vmem:[#allocation2 + $0x1a0] sm:$0xff]
    %v104 = vld [vmem:[#allocation2 + $0x1a8] sm:$0xff]
    %v105 = vld [vmem:[#allocation2 + $0x1b0] sm:$0xff]
    %v106 = vld [vmem:[#allocation2 + $0x1b8] sm:$0xff]
    %v107 = vld [vmem:[#allocation2 + $0x1c0] sm:$0xff]
    %v108 = vld [vmem:[#allocation2 + $0x1c8] sm:$0xff]
    %v109 = vld [vmem:[#allocation2 + $0x1d0] sm:$0xff]
    %v110 = vld [vmem:[#allocation2 + $0x1d8] sm:$0xff]
    %v111 = vld [vmem:[#allocation2 + $0x1e0] sm:$0xff]
    %v112 = vld [vmem:[#allocation2 + $0x1e8] sm:$0xff]
    %v113 = vld [vmem:[#allocation2 + $0x1f0] sm:$0xff]
    %v114 = vld [vmem:[#allocation2 + $0x1f8] sm:$0xff]
    %v115 = vld [vmem:[#allocation2 + $0x200] sm:$0xff]
    %v116 = vld [vmem:[#allocation2 + $0x208] sm:$0xff]
    %v117 = vld [vmem:[#allocation2 + $0x210] sm:$0xff]
    %v118 = vld [vmem:[#allocation2 + $0x218] sm:$0xff]
    %v119 = vld [vmem:[#allocation2 + $0x220] sm:$0xff]
    %v120 = vld [vmem:[#allocation2 + $0x228] sm:$0xff]
    %v121 = vld [vmem:[#allocation2 + $0x230] sm:$0xff]
    %v122 = vld [vmem:[#allocation2 + $0x238] sm:$0xff]
    %v123 = vld [vmem:[#allocation2 + $0x240] sm:$0xff]
    %v124 = vld [vmem:[#allocation2 + $0x248] sm:$0xff]
    %v125 = vld [vmem:[#allocation2 + $0x250] sm:$0xff]
    %v126 = vld [vmem:[#allocation2 + $0x258] sm:$0xff]
    %v127 = vld [vmem:[#allocation2 + $0x260] sm:$0xff]
    %v128 = vld [vmem:[#allocation2 + $0x268] sm:$0xff]
    %v129 = vld [vmem:[#allocation2 + $0x270] sm:$0xff]
    %v130 = vld [vmem:[#allocation2 + $0x278] sm:$0xff]
    %v131 = vld [vmem:[#allocation2 + $0x280] sm:$0xff]
    %v132 = vld [vmem:[#allocation2 + $0x288] sm:$0xff]
    %v133 = vld [vmem:[#allocation2 + $0x290] sm:$0xff]
    %v134 = vld [vmem:[#allocation2 + $0x298] sm:$0xff]
    %v135 = vld [vmem:[#allocation2 + $0x2a0] sm:$0xff]
    %v136 = vld [vmem:[#allocation2 + $0x2a8] sm:$0xff]
    %v137 = vld [vmem:[#allocation2 + $0x2b0] sm:$0xff]
    %v138 = vld [vmem:[#allocation2 + $0x2b8] sm:$0xff]
    %v139 = vld [vmem:[#allocation2 + $0x2c0] sm:$0xff]
    %v140 = vld [vmem:[#allocation2 + $0x2c8] sm:$0xff]
    %v141 = vld [vmem:[#allocation2 + $0x2d0] sm:$0xff]
    %v142 = vld [vmem:[#allocation2 + $0x2d8] sm:$0xff]
    %v143 = vld [vmem:[#allocation2 + $0x2e0] sm:$0xff]
    %v144 = vld [vmem:[#allocation2 + $0x2e8] sm:$0xff]
    %v145 = vld [vmem:[#allocation2 + $0x2f0] sm:$0xff]
    %v146 = vld [vmem:[#allocation2 + $0x2f8] sm:$0xff]
    %v147 = vld [vmem:[#allocation2 + $0x300] sm:$0xff]
    %v148 = vld [vmem:[#allocation2 + $0x308] sm:$0xff]
    %v149 = vld [vmem:[#allocation2 + $0x310] sm:$0xff]
    %v150 = vld [vmem:[#allocation2 + $0x318] sm:$0xff]
    %v151 = vld [vmem:[#allocation2 + $0x320] sm:$0xff]
    %v152 = vld [vmem:[#allocation2 + $0x328] sm:$0xff]
    %v153 = vld [vmem:[#allocation2 + $0x330] sm:$0xff]
    %v154 = vld [vmem:[#allocation2 + $0x338] sm:$0xff]
    %v155 = vld [vmem:[#allocation2 + $0x340] sm:$0xff]
    %v156 = vld [vmem:[#allocation2 + $0x348] sm:$0xff]
    %v157 = vld [vmem:[#allocation2 + $0x350] sm:$0xff]
    %v158 = vld [vmem:[#allocation2 + $0x358] sm:$0xff]
    %v159 = vld [vmem:[#allocation2 + $0x360] sm:$0xff]
    %v160 = vld [vmem:[#allocation2 + $0x368] sm:$0xff]
    %v161 = vld [vmem:[#allocation2 + $0x370] sm:$0xff]
    %v162 = vld [vmem:[#allocation2 + $0x378] sm:$0xff]
    %v163 = vld [vmem:[#allocation2 + $0x380] sm:$0xff]
    %v164 = vld [vmem:[#allocation2 + $0x388] sm:$0xff]
    %v165 = vld [vmem:[#allocation2 + $0x390] sm:$0xff]
    %v166 = vld [vmem:[#allocation2 + $0x398] sm:$0xff]
    %v167 = vld [vmem:[#allocation2 + $0x3a0] sm:$0xff]
    %v168 = vld [vmem:[#allocation2 + $0x3a8] sm:$0xff]
    %v169 = vld [vmem:[#allocation2 + $0x3b0] sm:$0xff]
    %v170 = vld [vmem:[#allocation2 + $0x3b8] sm:$0xff]
    %v171 = vld [vmem:[#allocation2 + $0x3c0] sm:$0xff]
    %v172 = vld [vmem:[#allocation2 + $0x3c8] sm:$0xff]
    %v173 = vld [vmem:[#allocation2 + $0x3d0] sm:$0xff]
    %v174 = vld [vmem:[#allocation2 + $0x3d8] sm:$0xff]
    %v175 = vld [vmem:[#allocation2 + $0x3e0] sm:$0xff]
    %v176 = vld [vmem:[#allocation2 + $0x3e8] sm:$0xff]
    %v177 = vld [vmem:[#allocation2 + $0x3f0] sm:$0xff]
    %v178 = vld [vmem:[#allocation2 + $0x3f8] sm:$0xff]
    %v179 = vld [vmem:[#allocation2 + $0x400] sm:$0xff]
    %v180 = vld [vmem:[#allocation2 + $0x408] sm:$0xff]
    %v181 = vld [vmem:[#allocation2 + $0x410] sm:$0xff]
    %v182 = vld [vmem:[#allocation2 + $0x418] sm:$0xff]
    %v183 = vld [vmem:[#allocation2 + $0x420] sm:$0xff]
    %v184 = vld [vmem:[#allocation2 + $0x428] sm:$0xff]
    %v185 = vld [vmem:[#allocation2 + $0x430] sm:$0xff]
    %v186 = vld [vmem:[#allocation2 + $0x438] sm:$0xff]
    %v187 = vld [vmem:[#allocation2 + $0x440] sm:$0xff]
    %v188 = vld [vmem:[#allocation2 + $0x448] sm:$0xff]
    %v189 = vld [vmem:[#allocation2 + $0x450] sm:$0xff]
    %v190 = vld [vmem:[#allocation2 + $0x458] sm:$0xff]
    %v191 = vld [vmem:[#allocation2 + $0x460] sm:$0xff]
    %v192 = vld [vmem:[#allocation2 + $0x468] sm:$0xff]
    %v193 = vld [vmem:[#allocation2 + $0x470] sm:$0xff]
    %v194 = vld [vmem:[#allocation2 + $0x478] sm:$0xff]
    %v195 = vld [vmem:[#allocation2 + $0x480] sm:$0xff]
    %v196 = vld [vmem:[#allocation2 + $0x488] sm:$0xff]
    %v197 = vld [vmem:[#allocation2 + $0x490] sm:$0xff]
    %v198 = vld [vmem:[#allocation2 + $0x498] sm:$0xff]
    %v199 = vld [vmem:[#allocation2 + $0x4a0] sm:$0xff]
    %v200 = vld [vmem:[#allocation2 + $0x4a8] sm:$0xff]
    %v201 = vld [vmem:[#allocation2 + $0x4b0] sm:$0xff]
    %v202 = vld [vmem:[#allocation2 + $0x4b8] sm:$0xff]
    %v203 = vld [vmem:[#allocation2 + $0x4c0] sm:$0xff]
    %v204 = vld [vmem:[#allocation2 + $0x4c8] sm:$0xff]
    %v205 = vld [vmem:[#allocation2 + $0x4d0] sm:$0xff]
    %v206 = vld [vmem:[#allocation2 + $0x4d8] sm:$0xff]
    %v207 = vld [vmem:[#allocation2 + $0x4e0] sm:$0xff]
    %v208 = vld [vmem:[#allocation2 + $0x4e8] sm:$0xff]
    %v209 = vld [vmem:[#allocation2 + $0x4f0] sm:$0xff]
    %v210 = vld [vmem:[#allocation2 + $0x4f8] sm:$0xff]
    %v211 = vld [vmem:[#allocation2 + $0x500] sm:$0xff]
    %v212 = vld [vmem:[#allocation2 + $0x508] sm:$0xff]
    %v213 = vld [vmem:[#allocation2 + $0x510] sm:$0xff]
    %v214 = vld [vmem:[#allocation2 + $0x518] sm:$0xff]
    %v215 = vld [vmem:[#allocation2 + $0x520] sm:$0xff]
    %v216 = vld [vmem:[#allocation2 + $0x528] sm:$0xff]
    %v217 = vld [vmem:[#allocation2 + $0x530] sm:$0xff]
    %v218 = vld [vmem:[#allocation2 + $0x538] sm:$0xff]
    %v219 = vld [vmem:[#allocation2 + $0x540] sm:$0xff]
    %v220 = vld [vmem:[#allocation2 + $0x548] sm:$0xff]
    %v221 = vld [vmem:[#allocation2 + $0x550] sm:$0xff]
    %v222 = vld [vmem:[#allocation2 + $0x558] sm:$0xff]
    %v223 = vld [vmem:[#allocation2 + $0x560] sm:$0xff]
    %v224 = vld [vmem:[#allocation2 + $0x568] sm:$0xff]
    %v225 = vld [vmem:[#allocation2 + $0x570] sm:$0xff]
    %v226 = vld [vmem:[#allocation2 + $0x578] sm:$0xff]
    %v227 = vld [vmem:[#allocation2 + $0x580] sm:$0xff]
    %v228 = vld [vmem:[#allocation2 + $0x588] sm:$0xff]
    %v229 = vld [vmem:[#allocation2 + $0x590] sm:$0xff]
    %v230 = vld [vmem:[#allocation2 + $0x598] sm:$0xff]
    %v231 = vld [vmem:[#allocation2 + $0x5a0] sm:$0xff]
    %v232 = vld [vmem:[#allocation2 + $0x5a8] sm:$0xff]
    %v233 = vld [vmem:[#allocation2 + $0x5b0] sm:$0xff]
    %v234 = vld [vmem:[#allocation2 + $0x5b8] sm:$0xff]
    %v235 = vld [vmem:[#allocation2 + $0x5c0] sm:$0xff]
    %v236 = vld [vmem:[#allocation2 + $0x5c8] sm:$0xff]
    %v237 = vld [vmem:[#allocation2 + $0x5d0] sm:$0xff]
    %v238 = vld [vmem:[#allocation2 + $0x5d8] sm:$0xff]
    %v239 = vld [vmem:[#allocation2 + $0x5e0] sm:$0xff]
    %v240 = vld [vmem:[#allocation2 + $0x5e8] sm:$0xff]
    %v241 = vld [vmem:[#allocation2 + $0x5f0] sm:$0xff]
    %v242 = vld [vmem:[#allocation2 + $0x5f8] sm:$0xff]
    %v243 = vld [vmem:[#allocation2 + $0x600] sm:$0xff]
    %v244 = vld [vmem:[#allocation2 + $0x608] sm:$0xff]
    %v245 = vld [vmem:[#allocation2 + $0x610] sm:$0xff]
    %v246 = vld [vmem:[#allocation2 + $0x618] sm:$0xff]
    %v247 = vld [vmem:[#allocation2 + $0x620] sm:$0xff]
    %v248 = vld [vmem:[#allocation2 + $0x628] sm:$0xff]
    %v249 = vld [vmem:[#allocation2 + $0x630] sm:$0xff]
    %v250 = vld [vmem:[#allocation2 + $0x638] sm:$0xff]
    %v251 = vld [vmem:[#allocation2 + $0x640] sm:$0xff]
    %v252 = vld [vmem:[#allocation2 + $0x648] sm:$0xff]
    %v253 = vld [vmem:[#allocation2 + $0x650] sm:$0xff]
    %v254 = vld [vmem:[#allocation2 + $0x658] sm:$0xff]
    %v255 = vld [vmem:[#allocation2 + $0x660] sm:$0xff]
    %v256 = vld [vmem:[#allocation2 + $0x668] sm:$0xff]
    %v257 = vld [vmem:[#allocation2 + $0x670] sm:$0xff]
    %v258 = vld [vmem:[#allocation2 + $0x678] sm:$0xff]
    %v259 = vld [vmem:[#allocation2 + $0x680] sm:$0xff]
    %v260 = vld [vmem:[#allocation2 + $0x688] sm:$0xff]
    %v261 = vld [vmem:[#allocation2 + $0x690] sm:$0xff]
    %v262 = vld [vmem:[#allocation2 + $0x698] sm:$0xff]
    %v263 = vld [vmem:[#allocation2 + $0x6a0] sm:$0xff]
    %v264 = vld [vmem:[#allocation2 + $0x6a8] sm:$0xff]
    %v265 = vld [vmem:[#allocation2 + $0x6b0] sm:$0xff]
    %v266 = vld [vmem:[#allocation2 + $0x6b8] sm:$0xff]
    %v267 = vld [vmem:[#allocation2 + $0x6c0] sm:$0xff]
    %v268 = vld [vmem:[#allocation2 + $0x6c8] sm:$0xff]
    %v269 = vld [vmem:[#allocation2 + $0x6d0] sm:$0xff]
    %v270 = vld [vmem:[#allocation2 + $0x6d8] sm:$0xff]
    %v271 = vld [vmem:[#allocation2 + $0x6e0] sm:$0xff]
    %v272 = vld [vmem:[#allocation2 + $0x6e8] sm:$0xff]
    %v273 = vld [vmem:[#allocation2 + $0x6f0] sm:$0xff]
    %v274 = vld [vmem:[#allocation2 + $0x6f8] sm:$0xff]
    %v275 = vld [vmem:[#allocation2 + $0x700] sm:$0xff]
    %v276 = vld [vmem:[#allocation2 + $0x708] sm:$0xff]
    %v277 = vld [vmem:[#allocation2 + $0x710] sm:$0xff]
    %v278 = vld [vmem:[#allocation2 + $0x718] sm:$0xff]
    %v279 = vld [vmem:[#allocation2 + $0x720] sm:$0xff]
    %v280 = vld [vmem:[#allocation2 + $0x728] sm:$0xff]
    %v281 = vld [vmem:[#allocation2 + $0x730] sm:$0xff]
    %v282 = vld [vmem:[#allocation2 + $0x738] sm:$0xff]
    %v283 = vld [vmem:[#allocation2 + $0x740] sm:$0xff]
    %v284 = vld [vmem:[#allocation2 + $0x748] sm:$0xff]
    %v285 = vld [vmem:[#allocation2 + $0x750] sm:$0xff]
    %v286 = vld [vmem:[#allocation2 + $0x758] sm:$0xff]
    %v287 = vld [vmem:[#allocation2 + $0x760] sm:$0xff]
    %v288 = vld [vmem:[#allocation2 + $0x768] sm:$0xff]
    %v289 = vld [vmem:[#allocation2 + $0x770] sm:$0xff]
    %v290 = vld [vmem:[#allocation2 + $0x778] sm:$0xff]
    %v291 = vld [vmem:[#allocation2 + $0x780] sm:$0xff]
    %v292 = vld [vmem:[#allocation2 + $0x788] sm:$0xff]
    %v293 = vld [vmem:[#allocation2 + $0x790] sm:$0xff]
    %v294 = vld [vmem:[#allocation2 + $0x798] sm:$0xff]
    %v295 = vld [vmem:[#allocation2 + $0x7a0] sm:$0xff]
    %v296 = vld [vmem:[#allocation2 + $0x7a8] sm:$0xff]
    %v297 = vld [vmem:[#allocation2 + $0x7b0] sm:$0xff]
    %v298 = vld [vmem:[#allocation2 + $0x7b8] sm:$0xff]
    %v299 = vld [vmem:[#allocation2 + $0x7c0] sm:$0xff]
    %v300 = vld [vmem:[#allocation2 + $0x7c8] sm:$0xff]
    %v301 = vld [vmem:[#allocation2 + $0x7d0] sm:$0xff]
    %v302 = vld [vmem:[#allocation2 + $0x7d8] sm:$0xff]
    %v303 = vld [vmem:[#allocation2 + $0x7e0] sm:$0xff]
    %v304 = vld [vmem:[#allocation2 + $0x7e8] sm:$0xff]
    %v305 = vld [vmem:[#allocation2 + $0x7f0] sm:$0xff]
    %v306 = vld [vmem:[#allocation2 + $0x7f8] sm:$0xff]
    %v307 = vld [vmem:[%s4] sm:$0xf]
    %v308 = vld [vmem:[%s5] sm:$0xf]
    %v309 = vld [vmem:[%s5 + $0x4] sm:$0xf]
    %v310 = vld [vmem:[%s5 + $0x8] sm:$0xf]
    %v311 = vld [vmem:[%s5 + $0xc] sm:$0xf]
    %v312 = vld [vmem:[%s5 + $0x10] sm:$0xf]
    %v313 = vld [vmem:[%s5 + $0x14] sm:$0xf]
    %v314 = vld [vmem:[%s5 + $0x18] sm:$0xf]
    %v315 = vld [vmem:[%s5 + $0x1c] sm:$0xf]
    %v316 = vld [vmem:[%s5 + $0x20] sm:$0xf]
    %v317 = vld [vmem:[%s5 + $0x24] sm:$0xf]
    %v318 = vld [vmem:[%s5 + $0x28] sm:$0xf]
    %v319 = vld [vmem:[%s5 + $0x2c] sm:$0xf]
    %v320 = vld [vmem:[%s5 + $0x30] sm:$0xf]
    %v321 = vld [vmem:[%s5 + $0x34] sm:$0xf]
    %v322 = vld [vmem:[%s5 + $0x38] sm:$0xf]
    %v323 = vld [vmem:[%s5 + $0x3c] sm:$0xf]
    %v324 = vld [vmem:[%s5 + $0x40] sm:$0xf]
    %v325 = vld [vmem:[%s5 + $0x44] sm:$0xf]
    %v326 = vld [vmem:[%s5 + $0x48] sm:$0xf]
    %v327 = vld [vmem:[%s5 + $0x4c] sm:$0xf]
    %v328 = vld [vmem:[%s5 + $0x50] sm:$0xf]
    %v329 = vld [vmem:[%s5 + $0x54] sm:$0xf]
    %v330 = vld [vmem:[%s5 + $0x58] sm:$0xf]
    %v331 = vld [vmem:[%s5 + $0x5c] sm:$0xf]
    %v332 = vld [vmem:[%s5 + $0x60] sm:$0xf]
    %v333 = vld [vmem:[%s5 + $0x64] sm:$0xf]
    %v334 = vld [vmem:[%s5 + $0x68] sm:$0xf]
    %v335 = vld [vmem:[%s5 + $0x6c] sm:$0xf]
    %v336 = vld [vmem:[%s5 + $0x70] sm:$0xf]
    %v337 = vld [vmem:[%s5 + $0x74] sm:$0xf]
    %v338 = vld [vmem:[%s5 + $0x78] sm:$0xf]
    %v339 = vld [vmem:[%s5 + $0x7c] sm:$0xf]
    %v340 = vld [vmem:[%s5 + $0x80] sm:$0xf]
    %v341 = vld [vmem:[%s5 + $0x84] sm:$0xf]
    %v342 = vld [vmem:[%s5 + $0x88] sm:$0xf]
    %v343 = vld [vmem:[%s5 + $0x8c] sm:$0xf]
    %v344 = vld [vmem:[%s5 + $0x90] sm:$0xf]
    %v345 = vld [vmem:[%s5 + $0x94] sm:$0xf]
    %v346 = vld [vmem:[%s5 + $0x98] sm:$0xf]
    %v347 = vld [vmem:[%s5 + $0x9c] sm:$0xf]
    %v348 = vld [vmem:[%s5 + $0xa0] sm:$0xf]
    %v349 = vld [vmem:[%s5 + $0xa4] sm:$0xf]
    %v350 = vld [vmem:[%s5 + $0xa8] sm:$0xf]
    %v351 = vld [vmem:[%s5 + $0xac] sm:$0xf]
    %v352 = vld [vmem:[%s5 + $0xb0] sm:$0xf]
    %v353 = vld [vmem:[%s5 + $0xb4] sm:$0xf]
    %v354 = vld [vmem:[%s5 + $0xb8] sm:$0xf]
    %v355 = vld [vmem:[%s5 + $0xbc] sm:$0xf]
    %v356 = vld [vmem:[%s5 + $0xc0] sm:$0xf]
    %v357 = vld [vmem:[%s5 + $0xc4] sm:$0xf]
    %v358 = vld [vmem:[%s5 + $0xc8] sm:$0xf]
    %v359 = vld [vmem:[%s5 + $0xcc] sm:$0xf]
    %v360 = vld [vmem:[%s5 + $0xd0] sm:$0xf]
    %v361 = vld [vmem:[%s5 + $0xd4] sm:$0xf]
    %v362 = vld [vmem:[%s5 + $0xd8] sm:$0xf]
    %v363 = vld [vmem:[%s5 + $0xdc] sm:$0xf]
    %v364 = vld [vmem:[%s5 + $0xe0] sm:$0xf]
    %v365 = vld [vmem:[%s5 + $0xe4] sm:$0xf]
    %v366 = vld [vmem:[%s5 + $0xe8] sm:$0xf]
    %v367 = vld [vmem:[%s5 + $0xec] sm:$0xf]
    %v368 = vld [vmem:[%s5 + $0xf0] sm:$0xf]
    %v369 = vld [vmem:[%s5 + $0xf4] sm:$0xf]
    %v370 = vld [vmem:[%s5 + $0xf8] sm:$0xf]
    %v371 = vld [vmem:[%s5 + $0xfc] sm:$0xf]
    %v372 = vld [vmem:[%s6] sm:$0x1]
    %v373 = vpack.c.bf16 %v41, %v41
    %v375 = vlaneseq
    %v376 = vshrl.u32 %v375, 7
    %v377 = vsub.s32 0, %v376
    %v378 = vrot.slane %v50, %v377
    %v379 = vlaneseq
    %v380 = vshrl.u32 %v379, 7
    %v381 = vsub.s32 1, %v380
    %v382 = vrot.slane %v50, %v381
    %v383 = vlaneseq
    %v384 = vshrl.u32 %v383, 7
    %v385 = vsub.s32 2, %v384
    %v386 = vrot.slane %v50, %v385
    %v387 = vlaneseq
    %v388 = vshrl.u32 %v387, 7
    %v389 = vsub.s32 3, %v388
    %v390 = vrot.slane %v50, %v389
    %v391 = vlaneseq
    %v392 = vshrl.u32 %v391, 7
    %v393 = vsub.s32 4, %v392
    %v394 = vrot.slane %v50, %v393
    %v395 = vlaneseq
    %v396 = vshrl.u32 %v395, 7
    %v397 = vsub.s32 5, %v396
    %v398 = vrot.slane %v50, %v397
    %v399 = vlaneseq
    %v400 = vshrl.u32 %v399, 7
    %v401 = vsub.s32 6, %v400
    %v402 = vrot.slane %v50, %v401
    %v403 = vlaneseq
    %v404 = vshrl.u32 %v403, 7
    %v405 = vsub.s32 7, %v404
    %v406 = vrot.slane %v50, %v405
    %v423 = vunpack.c.l.b16 %v42
    %v424 = vunpack.c.h.b16 %v42
    %v425 = vunpack.c.l.b16 %v43
    %v426 = vunpack.c.h.b16 %v43
    %v427 = vunpack.c.l.b16 %v44
    %v428 = vunpack.c.h.b16 %v44
    %v429 = vunpack.c.l.b16 %v45
    %v430 = vunpack.c.h.b16 %v45
    %v431 = vunpack.c.l.b16 %v46
    %v432 = vunpack.c.h.b16 %v46
    %v433 = vunpack.c.l.b16 %v47
    %v434 = vunpack.c.h.b16 %v47
    %v435 = vunpack.c.l.b16 %v48
    %v436 = vunpack.c.h.b16 %v48
    %v437 = vunpack.c.l.b16 %v49
    %v438 = vunpack.c.h.b16 %v49
    %v439 = vpack.c.b16 %v431, %v423
    %v440 = vpack.c.b16 %v432, %v424
    %v441 = vpack.c.b16 %v433, %v425
    %v442 = vpack.c.b16 %v434, %v426
    %v443 = vpack.c.b16 %v435, %v427
    %v444 = vpack.c.b16 %v436, %v428
    %v445 = vpack.c.b16 %v437, %v429
    %v446 = vpack.c.b16 %v438, %v430
    %vm447 = vcmask 80896
    %v449 = vsel %vm447, %v373, 0
    %vm451 = vcmask 1044480
    %v453 = vsel %vm451, %v439, 0
    %v456 = vsel %vm451, %v440, 0
    %v459 = vsel %vm451, %v441, 0
    %v462 = vsel %vm451, %v442, 0
    %v465 = vsel %vm451, %v443, 0
    %v468 = vsel %vm451, %v444, 0
    %v471 = vsel %vm451, %v445, 0
    %v474 = vsel %vm451, %v446, 0
    %476 = vmatprep.subr.bf16.mxu0 0
    %477 = vmatpush1.bf16.msra.mxu0 0
    %478 = vmatprep.subr.bf16.mxu0 0
    %479 = vmatpush1.bf16.msra.mxu0 0
    %480 = vmatprep.subr.bf16.mxu0 0
    %481 = vmatpush1.bf16.msra.mxu0 0
    %482 = vmatprep.subr.bf16.mxu0 0
    %483 = vmatpush1.bf16.msra.mxu0 0
    %484 = vmatprep.subr.bf16.mxu0 0
    %485 = vmatpush1.bf16.msra.mxu0 0
    %486 = vmatprep.subr.bf16.mxu0 0
    %487 = vmatpush1.bf16.msra.mxu0 0
    %488 = vmatprep.subr.bf16.mxu0 0
    %489 = vmatpush1.bf16.msra.mxu0 0
    %490 = vmatprep.subr.bf16.mxu0 %v456
    %491 = vmatpush1.bf16.msra.mxu0 %v453
    %492 = vmatprep.subr.bf16.mxu0 0
    %493 = vmatpush2.bf16.msra.mxu0 0
    %494 = vmatprep.subr.bf16.mxu0 0
    %495 = vmatpush2.bf16.msra.mxu0 0
    %496 = vmatprep.subr.bf16.mxu0 0
    %497 = vmatpush2.bf16.msra.mxu0 0
    %498 = vmatprep.subr.bf16.mxu0 0
    %499 = vmatpush2.bf16.msra.mxu0 0
    %500 = vmatprep.subr.bf16.mxu0 0
    %501 = vmatpush2.bf16.msra.mxu0 0
    %502 = vmatprep.subr.bf16.mxu0 0
    %503 = vmatpush2.bf16.msra.mxu0 0
    %504 = vmatprep.subr.bf16.mxu0 0
    %505 = vmatpush2.bf16.msra.mxu0 0
    %506 = vmatprep.subr.bf16.mxu0 0
    %507 = vmatpush2.bf16.msra.mxu0 0
    %508 = vmatprep.mubr.bf16.mxu0 0
    %509 = vmatmul.mubr.bf16.gmra.mxu0 %v449
    %v510 = vpop.f32.mrf.mxu0
    %v511 = vadd.f32 %v378, %v510
    %v512 = vpop.f32.mrf.mxu0
    %v513 = vadd.f32 %v382, %v512
    %v514 = vpop.f32.mrf.mxu0
    %v515 = vpop.f32.mrf.mxu0
    %516 = vdwg.mxu0
    %517 = vmatprep.subr.bf16.mxu0 0
    %518 = vmatpush1.bf16.msra.mxu0 0
    %519 = vmatprep.subr.bf16.mxu0 0
    %520 = vmatpush1.bf16.msra.mxu0 0
    %521 = vmatprep.subr.bf16.mxu0 0
    %522 = vmatpush1.bf16.msra.mxu0 0
    %523 = vmatprep.subr.bf16.mxu0 0
    %524 = vmatpush1.bf16.msra.mxu0 0
    %525 = vmatprep.subr.bf16.mxu0 0
    %526 = vmatpush1.bf16.msra.mxu0 0
    %527 = vmatprep.subr.bf16.mxu0 0
    %528 = vmatpush1.bf16.msra.mxu0 0
    %529 = vmatprep.subr.bf16.mxu0 0
    %530 = vmatpush1.bf16.msra.mxu0 0
    %531 = vmatprep.subr.bf16.mxu0 %v462
    %532 = vmatpush1.bf16.msra.mxu0 %v459
    %533 = vmatprep.subr.bf16.mxu0 0
    %534 = vmatpush2.bf16.msra.mxu0 0
    %535 = vmatprep.subr.bf16.mxu0 0
    %536 = vmatpush2.bf16.msra.mxu0 0
    %537 = vmatprep.subr.bf16.mxu0 0
    %538 = vmatpush2.bf16.msra.mxu0 0
    %539 = vmatprep.subr.bf16.mxu0 0
    %540 = vmatpush2.bf16.msra.mxu0 0
    %541 = vmatprep.subr.bf16.mxu0 0
    %542 = vmatpush2.bf16.msra.mxu0 0
    %543 = vmatprep.subr.bf16.mxu0 0
    %544 = vmatpush2.bf16.msra.mxu0 0
    %545 = vmatprep.subr.bf16.mxu0 0
    %546 = vmatpush2.bf16.msra.mxu0 0
    %547 = vmatprep.subr.bf16.mxu0 0
    %548 = vmatpush2.bf16.msra.mxu0 0
    %549 = vmatprep.mubr.bf16.mxu0 0
    %550 = vmatmul.mubr.bf16.gmra.mxu0 %v449
    %v551 = vpop.f32.mrf.mxu0
    %v552 = vadd.f32 %v386, %v551
    %v553 = vpop.f32.mrf.mxu0
    %v554 = vadd.f32 %v390, %v553
    %v555 = vpop.f32.mrf.mxu0
    %v556 = vpop.f32.mrf.mxu0
    %557 = vdwg.mxu0
    %558 = vmatprep.subr.bf16.mxu0 0
    %559 = vmatpush1.bf16.msra.mxu0 0
    %560 = vmatprep.subr.bf16.mxu0 0
    %561 = vmatpush1.bf16.msra.mxu0 0
    %562 = vmatprep.subr.bf16.mxu0 0
    %563 = vmatpush1.bf16.msra.mxu0 0
    %564 = vmatprep.subr.bf16.mxu0 0
    %565 = vmatpush1.bf16.msra.mxu0 0
    %566 = vmatprep.subr.bf16.mxu0 0
    %567 = vmatpush1.bf16.msra.mxu0 0
    %568 = vmatprep.subr.bf16.mxu0 0
    %569 = vmatpush1.bf16.msra.mxu0 0
    %570 = vmatprep.subr.bf16.mxu0 0
    %571 = vmatpush1.bf16.msra.mxu0 0
    %572 = vmatprep.subr.bf16.mxu0 %v468
    %573 = vmatpush1.bf16.msra.mxu0 %v465
    %574 = vmatprep.subr.bf16.mxu0 0
    %575 = vmatpush2.bf16.msra.mxu0 0
    %576 = vmatprep.subr.bf16.mxu0 0
    %577 = vmatpush2.bf16.msra.mxu0 0
    %578 = vmatprep.subr.bf16.mxu0 0
    %579 = vmatpush2.bf16.msra.mxu0 0
    %580 = vmatprep.subr.bf16.mxu0 0
    %581 = vmatpush2.bf16.msra.mxu0 0
    %582 = vmatprep.subr.bf16.mxu0 0
    %583 = vmatpush2.bf16.msra.mxu0 0
    %584 = vmatprep.subr.bf16.mxu0 0
    %585 = vmatpush2.bf16.msra.mxu0 0
    %586 = vmatprep.subr.bf16.mxu0 0
    %587 = vmatpush2.bf16.msra.mxu0 0
    %588 = vmatprep.subr.bf16.mxu0 0
    %589 = vmatpush2.bf16.msra.mxu0 0
    %590 = vmatprep.mubr.bf16.mxu0 0
    %591 = vmatmul.mubr.bf16.gmra.mxu0 %v449
    %v592 = vpop.f32.mrf.mxu0
    %v593 = vadd.f32 %v394, %v592
    %v594 = vpop.f32.mrf.mxu0
    %v595 = vadd.f32 %v398, %v594
    %v596 = vpop.f32.mrf.mxu0
    %v597 = vpop.f32.mrf.mxu0
    %598 = vdwg.mxu0
    %599 = vmatprep.subr.bf16.mxu0 0
    %600 = vmatpush1.bf16.msra.mxu0 0
    %601 = vmatprep.subr.bf16.mxu0 0
    %602 = vmatpush1.bf16.msra.mxu0 0
    %603 = vmatprep.subr.bf16.mxu0 0
    %604 = vmatpush1.bf16.msra.mxu0 0
    %605 = vmatprep.subr.bf16.mxu0 0
    %606 = vmatpush1.bf16.msra.mxu0 0
    %607 = vmatprep.subr.bf16.mxu0 0
    %608 = vmatpush1.bf16.msra.mxu0 0
    %609 = vmatprep.subr.bf16.mxu0 0
    %610 = vmatpush1.bf16.msra.mxu0 0
    %611 = vmatprep.subr.bf16.mxu0 0
    %612 = vmatpush1.bf16.msra.mxu0 0
    %613 = vmatprep.subr.bf16.mxu0 %v474
    %614 = vmatpush1.bf16.msra.mxu0 %v471
    %615 = vmatprep.subr.bf16.mxu0 0
    %616 = vmatpush2.bf16.msra.mxu0 0
    %617 = vmatprep.subr.bf16.mxu0 0
    %618 = vmatpush2.bf16.msra.mxu0 0
    %619 = vmatprep.subr.bf16.mxu0 0
    %620 = vmatpush2.bf16.msra.mxu0 0
    %621 = vmatprep.subr.bf16.mxu0 0
    %622 = vmatpush2.bf16.msra.mxu0 0
    %623 = vmatprep.subr.bf16.mxu0 0
    %624 = vmatpush2.bf16.msra.mxu0 0
    %625 = vmatprep.subr.bf16.mxu0 0
    %626 = vmatpush2.bf16.msra.mxu0 0
    %627 = vmatprep.subr.bf16.mxu0 0
    %628 = vmatpush2.bf16.msra.mxu0 0
    %629 = vmatprep.subr.bf16.mxu0 0
    %630 = vmatpush2.bf16.msra.mxu0 0
    %631 = vmatprep.mubr.bf16.mxu0 0
    %632 = vmatmul.mubr.bf16.gmra.mxu0 %v449
    %v633 = vpop.f32.mrf.mxu0
    %v634 = vadd.f32 %v402, %v633
    %v635 = vpop.f32.mrf.mxu0
    %v636 = vadd.f32 %v406, %v635
    %v637 = vpop.f32.mrf.mxu0
    %v638 = vpop.f32.mrf.mxu0
    %639 = vdwg.mxu0
    %v640 = vmax.f32 %v511, 0.0
    %v641 = vmax.f32 %v513, 0.0
    %v642 = vmax.f32 %v552, 0.0
    %v643 = vmax.f32 %v554, 0.0
    %v644 = vmax.f32 %v593, 0.0
    %v645 = vmax.f32 %v595, 0.0
    %v646 = vmax.f32 %v634, 0.0
    %v647 = vmax.f32 %v636, 0.0
    %v648 = vpack.c.bf16 %v640, %v640
    %v649 = vpack.c.bf16 %v641, %v641
    %v650 = vpack.c.bf16 %v642, %v642
    %v651 = vpack.c.bf16 %v643, %v643
    %v652 = vpack.c.bf16 %v644, %v644
    %v653 = vpack.c.bf16 %v645, %v645
    %v654 = vpack.c.bf16 %v646, %v646
    %v655 = vpack.c.bf16 %v647, %v647
    %v657 = vlaneseq
    %v658 = vshrl.u32 %v657, 7
    %v659 = vsub.s32 0, %v658
    %v660 = vrot.slane %v307, %v659
    %v661 = vlaneseq
    %v662 = vshrl.u32 %v661, 7
    %v663 = vsub.s32 1, %v662
    %v664 = vrot.slane %v307, %v663
    %v665 = vlaneseq
    %v666 = vshrl.u32 %v665, 7
    %v667 = vsub.s32 2, %v666
    %v668 = vrot.slane %v307, %v667
    %v669 = vlaneseq
    %v670 = vshrl.u32 %v669, 7
    %v671 = vsub.s32 3, %v670
    %v672 = vrot.slane %v307, %v671
    %v933 = vunpack.c.l.b16 %v51
    %v934 = vunpack.c.h.b16 %v51
    %v935 = vunpack.c.l.b16 %v52
    %v936 = vunpack.c.h.b16 %v52
    %v937 = vunpack.c.l.b16 %v53
    %v938 = vunpack.c.h.b16 %v53
    %v939 = vunpack.c.l.b16 %v54
    %v940 = vunpack.c.h.b16 %v54
    %v941 = vunpack.c.l.b16 %v55
    %v942 = vunpack.c.h.b16 %v55
    %v943 = vunpack.c.l.b16 %v56
    %v944 = vunpack.c.h.b16 %v56
    %v945 = vunpack.c.l.b16 %v57
    %v946 = vunpack.c.h.b16 %v57
    %v947 = vunpack.c.l.b16 %v58
    %v948 = vunpack.c.h.b16 %v58
    %v949 = vunpack.c.l.b16 %v59
    %v950 = vunpack.c.h.b16 %v59
    %v951 = vunpack.c.l.b16 %v60
    %v952 = vunpack.c.h.b16 %v60
    %v953 = vunpack.c.l.b16 %v61
    %v954 = vunpack.c.h.b16 %v61
    %v955 = vunpack.c.l.b16 %v62
    %v956 = vunpack.c.h.b16 %v62
    %v957 = vunpack.c.l.b16 %v63
    %v958 = vunpack.c.h.b16 %v63
    %v959 = vunpack.c.l.b16 %v64
    %v960 = vunpack.c.h.b16 %v64
    %v961 = vunpack.c.l.b16 %v65
    %v962 = vunpack.c.h.b16 %v65
    %v963 = vunpack.c.l.b16 %v66
    %v964 = vunpack.c.h.b16 %v66
    %v965 = vunpack.c.l.b16 %v67
    %v966 = vunpack.c.h.b16 %v67
    %v967 = vunpack.c.l.b16 %v68
    %v968 = vunpack.c.h.b16 %v68
    %v969 = vunpack.c.l.b16 %v69
    %v970 = vunpack.c.h.b16 %v69
    %v971 = vunpack.c.l.b16 %v70
    %v972 = vunpack.c.h.b16 %v70
    %v973 = vunpack.c.l.b16 %v71
    %v974 = vunpack.c.h.b16 %v71
    %v975 = vunpack.c.l.b16 %v72
    %v976 = vunpack.c.h.b16 %v72
    %v977 = vunpack.c.l.b16 %v73
    %v978 = vunpack.c.h.b16 %v73
    %v979 = vunpack.c.l.b16 %v74
    %v980 = vunpack.c.h.b16 %v74
    %v981 = vunpack.c.l.b16 %v75
    %v982 = vunpack.c.h.b16 %v75
    %v983 = vunpack.c.l.b16 %v76
    %v984 = vunpack.c.h.b16 %v76
    %v985 = vunpack.c.l.b16 %v77
    %v986 = vunpack.c.h.b16 %v77
    %v987 = vunpack.c.l.b16 %v78
    %v988 = vunpack.c.h.b16 %v78
    %v989 = vunpack.c.l.b16 %v79
    %v990 = vunpack.c.h.b16 %v79
    %v991 = vunpack.c.l.b16 %v80
    %v992 = vunpack.c.h.b16 %v80
    %v993 = vunpack.c.l.b16 %v81
    %v994 = vunpack.c.h.b16 %v81
    %v995 = vunpack.c.l.b16 %v82
    %v996 = vunpack.c.h.b16 %v82
    %v997 = vunpack.c.l.b16 %v83
    %v998 = vunpack.c.h.b16 %v83
    %v999 = vunpack.c.l.b16 %v84
    %v1000 = vunpack.c.h.b16 %v84
    %v1001 = vunpack.c.l.b16 %v85
    %v1002 = vunpack.c.h.b16 %v85
    %v1003 = vunpack.c.l.b16 %v86
    %v1004 = vunpack.c.h.b16 %v86
    %v1005 = vunpack.c.l.b16 %v87
    %v1006 = vunpack.c.h.b16 %v87
    %v1007 = vunpack.c.l.b16 %v88
    %v1008 = vunpack.c.h.b16 %v88
    %v1009 = vunpack.c.l.b16 %v89
    %v1010 = vunpack.c.h.b16 %v89
    %v1011 = vunpack.c.l.b16 %v90
    %v1012 = vunpack.c.h.b16 %v90
    %v1013 = vunpack.c.l.b16 %v91
    %v1014 = vunpack.c.h.b16 %v91
    %v1015 = vunpack.c.l.b16 %v92
    %v1016 = vunpack.c.h.b16 %v92
    %v1017 = vunpack.c.l.b16 %v93
    %v1018 = vunpack.c.h.b16 %v93
    %v1019 = vunpack.c.l.b16 %v94
    %v1020 = vunpack.c.h.b16 %v94
    %v1021 = vunpack.c.l.b16 %v95
    %v1022 = vunpack.c.h.b16 %v95
    %v1023 = vunpack.c.l.b16 %v96
    %v1024 = vunpack.c.h.b16 %v96
    %v1025 = vunpack.c.l.b16 %v97
    %v1026 = vunpack.c.h.b16 %v97
    %v1027 = vunpack.c.l.b16 %v98
    %v1028 = vunpack.c.h.b16 %v98
    %v1029 = vunpack.c.l.b16 %v99
    %v1030 = vunpack.c.h.b16 %v99
    %v1031 = vunpack.c.l.b16 %v100
    %v1032 = vunpack.c.h.b16 %v100
    %v1033 = vunpack.c.l.b16 %v101
    %v1034 = vunpack.c.h.b16 %v101
    %v1035 = vunpack.c.l.b16 %v102
    %v1036 = vunpack.c.h.b16 %v102
    %v1037 = vunpack.c.l.b16 %v103
    %v1038 = vunpack.c.h.b16 %v103
    %v1039 = vunpack.c.l.b16 %v104
    %v1040 = vunpack.c.h.b16 %v104
    %v1041 = vunpack.c.l.b16 %v105
    %v1042 = vunpack.c.h.b16 %v105
    %v1043 = vunpack.c.l.b16 %v106
    %v1044 = vunpack.c.h.b16 %v106
    %v1045 = vunpack.c.l.b16 %v107
    %v1046 = vunpack.c.h.b16 %v107
    %v1047 = vunpack.c.l.b16 %v108
    %v1048 = vunpack.c.h.b16 %v108
    %v1049 = vunpack.c.l.b16 %v109
    %v1050 = vunpack.c.h.b16 %v109
    %v1051 = vunpack.c.l.b16 %v110
    %v1052 = vunpack.c.h.b16 %v110
    %v1053 = vunpack.c.l.b16 %v111
    %v1054 = vunpack.c.h.b16 %v111
    %v1055 = vunpack.c.l.b16 %v112
    %v1056 = vunpack.c.h.b16 %v112
    %v1057 = vunpack.c.l.b16 %v113
    %v1058 = vunpack.c.h.b16 %v113
    %v1059 = vunpack.c.l.b16 %v114
    %v1060 = vunpack.c.h.b16 %v114
    %v1061 = vunpack.c.l.b16 %v115
    %v1062 = vunpack.c.h.b16 %v115
    %v1063 = vunpack.c.l.b16 %v116
    %v1064 = vunpack.c.h.b16 %v116
    %v1065 = vunpack.c.l.b16 %v117
    %v1066 = vunpack.c.h.b16 %v117
    %v1067 = vunpack.c.l.b16 %v118
    %v1068 = vunpack.c.h.b16 %v118
    %v1069 = vunpack.c.l.b16 %v119
    %v1070 = vunpack.c.h.b16 %v119
    %v1071 = vunpack.c.l.b16 %v120
    %v1072 = vunpack.c.h.b16 %v120
    %v1073 = vunpack.c.l.b16 %v121
    %v1074 = vunpack.c.h.b16 %v121
    %v1075 = vunpack.c.l.b16 %v122
    %v1076 = vunpack.c.h.b16 %v122
    %v1077 = vunpack.c.l.b16 %v123
    %v1078 = vunpack.c.h.b16 %v123
    %v1079 = vunpack.c.l.b16 %v124
    %v1080 = vunpack.c.h.b16 %v124
    %v1081 = vunpack.c.l.b16 %v125
    %v1082 = vunpack.c.h.b16 %v125
    %v1083 = vunpack.c.l.b16 %v126
    %v1084 = vunpack.c.h.b16 %v126
    %v1085 = vunpack.c.l.b16 %v127
    %v1086 = vunpack.c.h.b16 %v127
    %v1087 = vunpack.c.l.b16 %v128
    %v1088 = vunpack.c.h.b16 %v128
    %v1089 = vunpack.c.l.b16 %v129
    %v1090 = vunpack.c.h.b16 %v129
    %v1091 = vunpack.c.l.b16 %v130
    %v1092 = vunpack.c.h.b16 %v130
    %v1093 = vunpack.c.l.b16 %v131
    %v1094 = vunpack.c.h.b16 %v131
    %v1095 = vunpack.c.l.b16 %v132
    %v1096 = vunpack.c.h.b16 %v132
    %v1097 = vunpack.c.l.b16 %v133
    %v1098 = vunpack.c.h.b16 %v133
    %v1099 = vunpack.c.l.b16 %v134
    %v1100 = vunpack.c.h.b16 %v134
    %v1101 = vunpack.c.l.b16 %v135
    %v1102 = vunpack.c.h.b16 %v135
    %v1103 = vunpack.c.l.b16 %v136
    %v1104 = vunpack.c.h.b16 %v136
    %v1105 = vunpack.c.l.b16 %v137
    %v1106 = vunpack.c.h.b16 %v137
    %v1107 = vunpack.c.l.b16 %v138
    %v1108 = vunpack.c.h.b16 %v138
    %v1109 = vunpack.c.l.b16 %v139
    %v1110 = vunpack.c.h.b16 %v139
    %v1111 = vunpack.c.l.b16 %v140
    %v1112 = vunpack.c.h.b16 %v140
    %v1113 = vunpack.c.l.b16 %v141
    %v1114 = vunpack.c.h.b16 %v141
    %v1115 = vunpack.c.l.b16 %v142
    %v1116 = vunpack.c.h.b16 %v142
    %v1117 = vunpack.c.l.b16 %v143
    %v1118 = vunpack.c.h.b16 %v143
    %v1119 = vunpack.c.l.b16 %v144
    %v1120 = vunpack.c.h.b16 %v144
    %v1121 = vunpack.c.l.b16 %v145
    %v1122 = vunpack.c.h.b16 %v145
    %v1123 = vunpack.c.l.b16 %v146
    %v1124 = vunpack.c.h.b16 %v146
    %v1125 = vunpack.c.l.b16 %v147
    %v1126 = vunpack.c.h.b16 %v147
    %v1127 = vunpack.c.l.b16 %v148
    %v1128 = vunpack.c.h.b16 %v148
    %v1129 = vunpack.c.l.b16 %v149
    %v1130 = vunpack.c.h.b16 %v149
    %v1131 = vunpack.c.l.b16 %v150
    %v1132 = vunpack.c.h.b16 %v150
    %v1133 = vunpack.c.l.b16 %v151
    %v1134 = vunpack.c.h.b16 %v151
    %v1135 = vunpack.c.l.b16 %v152
    %v1136 = vunpack.c.h.b16 %v152
    %v1137 = vunpack.c.l.b16 %v153
    %v1138 = vunpack.c.h.b16 %v153
    %v1139 = vunpack.c.l.b16 %v154
    %v1140 = vunpack.c.h.b16 %v154
    %v1141 = vunpack.c.l.b16 %v155
    %v1142 = vunpack.c.h.b16 %v155
    %v1143 = vunpack.c.l.b16 %v156
    %v1144 = vunpack.c.h.b16 %v156
    %v1145 = vunpack.c.l.b16 %v157
    %v1146 = vunpack.c.h.b16 %v157
    %v1147 = vunpack.c.l.b16 %v158
    %v1148 = vunpack.c.h.b16 %v158
    %v1149 = vunpack.c.l.b16 %v159
    %v1150 = vunpack.c.h.b16 %v159
    %v1151 = vunpack.c.l.b16 %v160
    %v1152 = vunpack.c.h.b16 %v160
    %v1153 = vunpack.c.l.b16 %v161
    %v1154 = vunpack.c.h.b16 %v161
    %v1155 = vunpack.c.l.b16 %v162
    %v1156 = vunpack.c.h.b16 %v162
    %v1157 = vunpack.c.l.b16 %v163
    %v1158 = vunpack.c.h.b16 %v163
    %v1159 = vunpack.c.l.b16 %v164
    %v1160 = vunpack.c.h.b16 %v164
    %v1161 = vunpack.c.l.b16 %v165
    %v1162 = vunpack.c.h.b16 %v165
    %v1163 = vunpack.c.l.b16 %v166
    %v1164 = vunpack.c.h.b16 %v166
    %v1165 = vunpack.c.l.b16 %v167
    %v1166 = vunpack.c.h.b16 %v167
    %v1167 = vunpack.c.l.b16 %v168
    %v1168 = vunpack.c.h.b16 %v168
    %v1169 = vunpack.c.l.b16 %v169
    %v1170 = vunpack.c.h.b16 %v169
    %v1171 = vunpack.c.l.b16 %v170
    %v1172 = vunpack.c.h.b16 %v170
    %v1173 = vunpack.c.l.b16 %v171
    %v1174 = vunpack.c.h.b16 %v171
    %v1175 = vunpack.c.l.b16 %v172
    %v1176 = vunpack.c.h.b16 %v172
    %v1177 = vunpack.c.l.b16 %v173
    %v1178 = vunpack.c.h.b16 %v173
    %v1179 = vunpack.c.l.b16 %v174
    %v1180 = vunpack.c.h.b16 %v174
    %v1181 = vunpack.c.l.b16 %v175
    %v1182 = vunpack.c.h.b16 %v175
    %v1183 = vunpack.c.l.b16 %v176
    %v1184 = vunpack.c.h.b16 %v176
    %v1185 = vunpack.c.l.b16 %v177
    %v1186 = vunpack.c.h.b16 %v177
    %v1187 = vunpack.c.l.b16 %v178
    %v1188 = vunpack.c.h.b16 %v178
    %v1189 = vunpack.c.l.b16 %v179
    %v1190 = vunpack.c.h.b16 %v179
    %v1191 = vunpack.c.l.b16 %v180
    %v1192 = vunpack.c.h.b16 %v180
    %v1193 = vunpack.c.l.b16 %v181
    %v1194 = vunpack.c.h.b16 %v181
    %v1195 = vunpack.c.l.b16 %v182
    %v1196 = vunpack.c.h.b16 %v182
    %v1197 = vunpack.c.l.b16 %v183
    %v1198 = vunpack.c.h.b16 %v183
    %v1199 = vunpack.c.l.b16 %v184
    %v1200 = vunpack.c.h.b16 %v184
    %v1201 = vunpack.c.l.b16 %v185
    %v1202 = vunpack.c.h.b16 %v185
    %v1203 = vunpack.c.l.b16 %v186
    %v1204 = vunpack.c.h.b16 %v186
    %v1205 = vunpack.c.l.b16 %v187
    %v1206 = vunpack.c.h.b16 %v187
    %v1207 = vunpack.c.l.b16 %v188
    %v1208 = vunpack.c.h.b16 %v188
    %v1209 = vunpack.c.l.b16 %v189
    %v1210 = vunpack.c.h.b16 %v189
    %v1211 = vunpack.c.l.b16 %v190
    %v1212 = vunpack.c.h.b16 %v190
    %v1213 = vunpack.c.l.b16 %v191
    %v1214 = vunpack.c.h.b16 %v191
    %v1215 = vunpack.c.l.b16 %v192
    %v1216 = vunpack.c.h.b16 %v192
    %v1217 = vunpack.c.l.b16 %v193
    %v1218 = vunpack.c.h.b16 %v193
    %v1219 = vunpack.c.l.b16 %v194
    %v1220 = vunpack.c.h.b16 %v194
    %v1221 = vunpack.c.l.b16 %v195
    %v1222 = vunpack.c.h.b16 %v195
    %v1223 = vunpack.c.l.b16 %v196
    %v1224 = vunpack.c.h.b16 %v196
    %v1225 = vunpack.c.l.b16 %v197
    %v1226 = vunpack.c.h.b16 %v197
    %v1227 = vunpack.c.l.b16 %v198
    %v1228 = vunpack.c.h.b16 %v198
    %v1229 = vunpack.c.l.b16 %v199
    %v1230 = vunpack.c.h.b16 %v199
    %v1231 = vunpack.c.l.b16 %v200
    %v1232 = vunpack.c.h.b16 %v200
    %v1233 = vunpack.c.l.b16 %v201
    %v1234 = vunpack.c.h.b16 %v201
    %v1235 = vunpack.c.l.b16 %v202
    %v1236 = vunpack.c.h.b16 %v202
    %v1237 = vunpack.c.l.b16 %v203
    %v1238 = vunpack.c.h.b16 %v203
    %v1239 = vunpack.c.l.b16 %v204
    %v1240 = vunpack.c.h.b16 %v204
    %v1241 = vunpack.c.l.b16 %v205
    %v1242 = vunpack.c.h.b16 %v205
    %v1243 = vunpack.c.l.b16 %v206
    %v1244 = vunpack.c.h.b16 %v206
    %v1245 = vunpack.c.l.b16 %v207
    %v1246 = vunpack.c.h.b16 %v207
    %v1247 = vunpack.c.l.b16 %v208
    %v1248 = vunpack.c.h.b16 %v208
    %v1249 = vunpack.c.l.b16 %v209
    %v1250 = vunpack.c.h.b16 %v209
    %v1251 = vunpack.c.l.b16 %v210
    %v1252 = vunpack.c.h.b16 %v210
    %v1253 = vunpack.c.l.b16 %v211
    %v1254 = vunpack.c.h.b16 %v211
    %v1255 = vunpack.c.l.b16 %v212
    %v1256 = vunpack.c.h.b16 %v212
    %v1257 = vunpack.c.l.b16 %v213
    %v1258 = vunpack.c.h.b16 %v213
    %v1259 = vunpack.c.l.b16 %v214
    %v1260 = vunpack.c.h.b16 %v214
    %v1261 = vunpack.c.l.b16 %v215
    %v1262 = vunpack.c.h.b16 %v215
    %v1263 = vunpack.c.l.b16 %v216
    %v1264 = vunpack.c.h.b16 %v216
    %v1265 = vunpack.c.l.b16 %v217
    %v1266 = vunpack.c.h.b16 %v217
    %v1267 = vunpack.c.l.b16 %v218
    %v1268 = vunpack.c.h.b16 %v218
    %v1269 = vunpack.c.l.b16 %v219
    %v1270 = vunpack.c.h.b16 %v219
    %v1271 = vunpack.c.l.b16 %v220
    %v1272 = vunpack.c.h.b16 %v220
    %v1273 = vunpack.c.l.b16 %v221
    %v1274 = vunpack.c.h.b16 %v221
    %v1275 = vunpack.c.l.b16 %v222
    %v1276 = vunpack.c.h.b16 %v222
    %v1277 = vunpack.c.l.b16 %v223
    %v1278 = vunpack.c.h.b16 %v223
    %v1279 = vunpack.c.l.b16 %v224
    %v1280 = vunpack.c.h.b16 %v224
    %v1281 = vunpack.c.l.b16 %v225
    %v1282 = vunpack.c.h.b16 %v225
    %v1283 = vunpack.c.l.b16 %v226
    %v1284 = vunpack.c.h.b16 %v226
    %v1285 = vunpack.c.l.b16 %v227
    %v1286 = vunpack.c.h.b16 %v227
    %v1287 = vunpack.c.l.b16 %v228
    %v1288 = vunpack.c.h.b16 %v228
    %v1289 = vunpack.c.l.b16 %v229
    %v1290 = vunpack.c.h.b16 %v229
    %v1291 = vunpack.c.l.b16 %v230
    %v1292 = vunpack.c.h.b16 %v230
    %v1293 = vunpack.c.l.b16 %v231
    %v1294 = vunpack.c.h.b16 %v231
    %v1295 = vunpack.c.l.b16 %v232
    %v1296 = vunpack.c.h.b16 %v232
    %v1297 = vunpack.c.l.b16 %v233
    %v1298 = vunpack.c.h.b16 %v233
    %v1299 = vunpack.c.l.b16 %v234
    %v1300 = vunpack.c.h.b16 %v234
    %v1301 = vunpack.c.l.b16 %v235
    %v1302 = vunpack.c.h.b16 %v235
    %v1303 = vunpack.c.l.b16 %v236
    %v1304 = vunpack.c.h.b16 %v236
    %v1305 = vunpack.c.l.b16 %v237
    %v1306 = vunpack.c.h.b16 %v237
    %v1307 = vunpack.c.l.b16 %v238
    %v1308 = vunpack.c.h.b16 %v238
    %v1309 = vunpack.c.l.b16 %v239
    %v1310 = vunpack.c.h.b16 %v239
    %v1311 = vunpack.c.l.b16 %v240
    %v1312 = vunpack.c.h.b16 %v240
    %v1313 = vunpack.c.l.b16 %v241
    %v1314 = vunpack.c.h.b16 %v241
    %v1315 = vunpack.c.l.b16 %v242
    %v1316 = vunpack.c.h.b16 %v242
    %v1317 = vunpack.c.l.b16 %v243
    %v1318 = vunpack.c.h.b16 %v243
    %v1319 = vunpack.c.l.b16 %v244
    %v1320 = vunpack.c.h.b16 %v244
    %v1321 = vunpack.c.l.b16 %v245
    %v1322 = vunpack.c.h.b16 %v245
    %v1323 = vunpack.c.l.b16 %v246
    %v1324 = vunpack.c.h.b16 %v246
    %v1325 = vunpack.c.l.b16 %v247
    %v1326 = vunpack.c.h.b16 %v247
    %v1327 = vunpack.c.l.b16 %v248
    %v1328 = vunpack.c.h.b16 %v248
    %v1329 = vunpack.c.l.b16 %v249
    %v1330 = vunpack.c.h.b16 %v249
    %v1331 = vunpack.c.l.b16 %v250
    %v1332 = vunpack.c.h.b16 %v250
    %v1333 = vunpack.c.l.b16 %v251
    %v1334 = vunpack.c.h.b16 %v251
    %v1335 = vunpack.c.l.b16 %v252
    %v1336 = vunpack.c.h.b16 %v252
    %v1337 = vunpack.c.l.b16 %v253
    %v1338 = vunpack.c.h.b16 %v253
    %v1339 = vunpack.c.l.b16 %v254
    %v1340 = vunpack.c.h.b16 %v254
    %v1341 = vunpack.c.l.b16 %v255
    %v1342 = vunpack.c.h.b16 %v255
    %v1343 = vunpack.c.l.b16 %v256
    %v1344 = vunpack.c.h.b16 %v256
    %v1345 = vunpack.c.l.b16 %v257
    %v1346 = vunpack.c.h.b16 %v257
    %v1347 = vunpack.c.l.b16 %v258
    %v1348 = vunpack.c.h.b16 %v258
    %v1349 = vunpack.c.l.b16 %v259
    %v1350 = vunpack.c.h.b16 %v259
    %v1351 = vunpack.c.l.b16 %v260
    %v1352 = vunpack.c.h.b16 %v260
    %v1353 = vunpack.c.l.b16 %v261
    %v1354 = vunpack.c.h.b16 %v261
    %v1355 = vunpack.c.l.b16 %v262
    %v1356 = vunpack.c.h.b16 %v262
    %v1357 = vunpack.c.l.b16 %v263
    %v1358 = vunpack.c.h.b16 %v263
    %v1359 = vunpack.c.l.b16 %v264
    %v1360 = vunpack.c.h.b16 %v264
    %v1361 = vunpack.c.l.b16 %v265
    %v1362 = vunpack.c.h.b16 %v265
    %v1363 = vunpack.c.l.b16 %v266
    %v1364 = vunpack.c.h.b16 %v266
    %v1365 = vunpack.c.l.b16 %v267
    %v1366 = vunpack.c.h.b16 %v267
    %v1367 = vunpack.c.l.b16 %v268
    %v1368 = vunpack.c.h.b16 %v268
    %v1369 = vunpack.c.l.b16 %v269
    %v1370 = vunpack.c.h.b16 %v269
    %v1371 = vunpack.c.l.b16 %v270
    %v1372 = vunpack.c.h.b16 %v270
    %v1373 = vunpack.c.l.b16 %v271
    %v1374 = vunpack.c.h.b16 %v271
    %v1375 = vunpack.c.l.b16 %v272
    %v1376 = vunpack.c.h.b16 %v272
    %v1377 = vunpack.c.l.b16 %v273
    %v1378 = vunpack.c.h.b16 %v273
    %v1379 = vunpack.c.l.b16 %v274
    %v1380 = vunpack.c.h.b16 %v274
    %v1381 = vunpack.c.l.b16 %v275
    %v1382 = vunpack.c.h.b16 %v275
    %v1383 = vunpack.c.l.b16 %v276
    %v1384 = vunpack.c.h.b16 %v276
    %v1385 = vunpack.c.l.b16 %v277
    %v1386 = vunpack.c.h.b16 %v277
    %v1387 = vunpack.c.l.b16 %v278
    %v1388 = vunpack.c.h.b16 %v278
    %v1389 = vunpack.c.l.b16 %v279
    %v1390 = vunpack.c.h.b16 %v279
    %v1391 = vunpack.c.l.b16 %v280
    %v1392 = vunpack.c.h.b16 %v280
    %v1393 = vunpack.c.l.b16 %v281
    %v1394 = vunpack.c.h.b16 %v281
    %v1395 = vunpack.c.l.b16 %v282
    %v1396 = vunpack.c.h.b16 %v282
    %v1397 = vunpack.c.l.b16 %v283
    %v1398 = vunpack.c.h.b16 %v283
    %v1399 = vunpack.c.l.b16 %v284
    %v1400 = vunpack.c.h.b16 %v284
    %v1401 = vunpack.c.l.b16 %v285
    %v1402 = vunpack.c.h.b16 %v285
    %v1403 = vunpack.c.l.b16 %v286
    %v1404 = vunpack.c.h.b16 %v286
    %v1405 = vunpack.c.l.b16 %v287
    %v1406 = vunpack.c.h.b16 %v287
    %v1407 = vunpack.c.l.b16 %v288
    %v1408 = vunpack.c.h.b16 %v288
    %v1409 = vunpack.c.l.b16 %v289
    %v1410 = vunpack.c.h.b16 %v289
    %v1411 = vunpack.c.l.b16 %v290
    %v1412 = vunpack.c.h.b16 %v290
    %v1413 = vunpack.c.l.b16 %v291
    %v1414 = vunpack.c.h.b16 %v291
    %v1415 = vunpack.c.l.b16 %v292
    %v1416 = vunpack.c.h.b16 %v292
    %v1417 = vunpack.c.l.b16 %v293
    %v1418 = vunpack.c.h.b16 %v293
    %v1419 = vunpack.c.l.b16 %v294
    %v1420 = vunpack.c.h.b16 %v294
    %v1421 = vunpack.c.l.b16 %v295
    %v1422 = vunpack.c.h.b16 %v295
    %v1423 = vunpack.c.l.b16 %v296
    %v1424 = vunpack.c.h.b16 %v296
    %v1425 = vunpack.c.l.b16 %v297
    %v1426 = vunpack.c.h.b16 %v297
    %v1427 = vunpack.c.l.b16 %v298
    %v1428 = vunpack.c.h.b16 %v298
    %v1429 = vunpack.c.l.b16 %v299
    %v1430 = vunpack.c.h.b16 %v299
    %v1431 = vunpack.c.l.b16 %v300
    %v1432 = vunpack.c.h.b16 %v300
    %v1433 = vunpack.c.l.b16 %v301
    %v1434 = vunpack.c.h.b16 %v301
    %v1435 = vunpack.c.l.b16 %v302
    %v1436 = vunpack.c.h.b16 %v302
    %v1437 = vunpack.c.l.b16 %v303
    %v1438 = vunpack.c.h.b16 %v303
    %v1439 = vunpack.c.l.b16 %v304
    %v1440 = vunpack.c.h.b16 %v304
    %v1441 = vunpack.c.l.b16 %v305
    %v1442 = vunpack.c.h.b16 %v305
    %v1443 = vunpack.c.l.b16 %v306
    %v1444 = vunpack.c.h.b16 %v306
    %v1445 = vpack.c.b16 %v937, %v933
    %v1446 = vpack.c.b16 %v938, %v934
    %v1447 = vpack.c.b16 %v939, %v935
    %v1448 = vpack.c.b16 %v940, %v936
    %v1449 = vpack.c.b16 %v945, %v941
    %v1450 = vpack.c.b16 %v946, %v942
    %v1451 = vpack.c.b16 %v947, %v943
    %v1452 = vpack.c.b16 %v948, %v944
    %v1453 = vpack.c.b16 %v953, %v949
    %v1454 = vpack.c.b16 %v954, %v950
    %v1455 = vpack.c.b16 %v955, %v951
    %v1456 = vpack.c.b16 %v956, %v952
    %v1457 = vpack.c.b16 %v961, %v957
    %v1458 = vpack.c.b16 %v962, %v958
    %v1459 = vpack.c.b16 %v963, %v959
    %v1460 = vpack.c.b16 %v964, %v960
    %v1461 = vpack.c.b16 %v969, %v965
    %v1462 = vpack.c.b16 %v970, %v966
    %v1463 = vpack.c.b16 %v971, %v967
    %v1464 = vpack.c.b16 %v972, %v968
    %v1465 = vpack.c.b16 %v977, %v973
    %v1466 = vpack.c.b16 %v978, %v974
    %v1467 = vpack.c.b16 %v979, %v975
    %v1468 = vpack.c.b16 %v980, %v976
    %v1469 = vpack.c.b16 %v985, %v981
    %v1470 = vpack.c.b16 %v986, %v982
    %v1471 = vpack.c.b16 %v987, %v983
    %v1472 = vpack.c.b16 %v988, %v984
    %v1473 = vpack.c.b16 %v993, %v989
    %v1474 = vpack.c.b16 %v994, %v990
    %v1475 = vpack.c.b16 %v995, %v991
    %v1476 = vpack.c.b16 %v996, %v992
    %v1477 = vpack.c.b16 %v1001, %v997
    %v1478 = vpack.c.b16 %v1002, %v998
    %v1479 = vpack.c.b16 %v1003, %v999
    %v1480 = vpack.c.b16 %v1004, %v1000
    %v1481 = vpack.c.b16 %v1009, %v1005
    %v1482 = vpack.c.b16 %v1010, %v1006
    %v1483 = vpack.c.b16 %v1011, %v1007
    %v1484 = vpack.c.b16 %v1012, %v1008
    %v1485 = vpack.c.b16 %v1017, %v1013
    %v1486 = vpack.c.b16 %v1018, %v1014
    %v1487 = vpack.c.b16 %v1019, %v1015
    %v1488 = vpack.c.b16 %v1020, %v1016
    %v1489 = vpack.c.b16 %v1025, %v1021
    %v1490 = vpack.c.b16 %v1026, %v1022
    %v1491 = vpack.c.b16 %v1027, %v1023
    %v1492 = vpack.c.b16 %v1028, %v1024
    %v1493 = vpack.c.b16 %v1033, %v1029
    %v1494 = vpack.c.b16 %v1034, %v1030
    %v1495 = vpack.c.b16 %v1035, %v1031
    %v1496 = vpack.c.b16 %v1036, %v1032
    %v1497 = vpack.c.b16 %v1041, %v1037
    %v1498 = vpack.c.b16 %v1042, %v1038
    %v1499 = vpack.c.b16 %v1043, %v1039
    %v1500 = vpack.c.b16 %v1044, %v1040
    %v1501 = vpack.c.b16 %v1049, %v1045
    %v1502 = vpack.c.b16 %v1050, %v1046
    %v1503 = vpack.c.b16 %v1051, %v1047
    %v1504 = vpack.c.b16 %v1052, %v1048
    %v1505 = vpack.c.b16 %v1057, %v1053
    %v1506 = vpack.c.b16 %v1058, %v1054
    %v1507 = vpack.c.b16 %v1059, %v1055
    %v1508 = vpack.c.b16 %v1060, %v1056
    %v1509 = vpack.c.b16 %v1065, %v1061
    %v1510 = vpack.c.b16 %v1066, %v1062
    %v1511 = vpack.c.b16 %v1067, %v1063
    %v1512 = vpack.c.b16 %v1068, %v1064
    %v1513 = vpack.c.b16 %v1073, %v1069
    %v1514 = vpack.c.b16 %v1074, %v1070
    %v1515 = vpack.c.b16 %v1075, %v1071
    %v1516 = vpack.c.b16 %v1076, %v1072
    %v1517 = vpack.c.b16 %v1081, %v1077
    %v1518 = vpack.c.b16 %v1082, %v1078
    %v1519 = vpack.c.b16 %v1083, %v1079
    %v1520 = vpack.c.b16 %v1084, %v1080
    %v1521 = vpack.c.b16 %v1089, %v1085
    %v1522 = vpack.c.b16 %v1090, %v1086
    %v1523 = vpack.c.b16 %v1091, %v1087
    %v1524 = vpack.c.b16 %v1092, %v1088
    %v1525 = vpack.c.b16 %v1097, %v1093
    %v1526 = vpack.c.b16 %v1098, %v1094
    %v1527 = vpack.c.b16 %v1099, %v1095
    %v1528 = vpack.c.b16 %v1100, %v1096
    %v1529 = vpack.c.b16 %v1105, %v1101
    %v1530 = vpack.c.b16 %v1106, %v1102
    %v1531 = vpack.c.b16 %v1107, %v1103
    %v1532 = vpack.c.b16 %v1108, %v1104
    %v1533 = vpack.c.b16 %v1113, %v1109
    %v1534 = vpack.c.b16 %v1114, %v1110
    %v1535 = vpack.c.b16 %v1115, %v1111
    %v1536 = vpack.c.b16 %v1116, %v1112
    %v1537 = vpack.c.b16 %v1121, %v1117
    %v1538 = vpack.c.b16 %v1122, %v1118
    %v1539 = vpack.c.b16 %v1123, %v1119
    %v1540 = vpack.c.b16 %v1124, %v1120
    %v1541 = vpack.c.b16 %v1129, %v1125
    %v1542 = vpack.c.b16 %v1130, %v1126
    %v1543 = vpack.c.b16 %v1131, %v1127
    %v1544 = vpack.c.b16 %v1132, %v1128
    %v1545 = vpack.c.b16 %v1137, %v1133
    %v1546 = vpack.c.b16 %v1138, %v1134
    %v1547 = vpack.c.b16 %v1139, %v1135
    %v1548 = vpack.c.b16 %v1140, %v1136
    %v1549 = vpack.c.b16 %v1145, %v1141
    %v1550 = vpack.c.b16 %v1146, %v1142
    %v1551 = vpack.c.b16 %v1147, %v1143
    %v1552 = vpack.c.b16 %v1148, %v1144
    %v1553 = vpack.c.b16 %v1153, %v1149
    %v1554 = vpack.c.b16 %v1154, %v1150
    %v1555 = vpack.c.b16 %v1155, %v1151
    %v1556 = vpack.c.b16 %v1156, %v1152
    %v1557 = vpack.c.b16 %v1161, %v1157
    %v1558 = vpack.c.b16 %v1162, %v1158
    %v1559 = vpack.c.b16 %v1163, %v1159
    %v1560 = vpack.c.b16 %v1164, %v1160
    %v1561 = vpack.c.b16 %v1169, %v1165
    %v1562 = vpack.c.b16 %v1170, %v1166
    %v1563 = vpack.c.b16 %v1171, %v1167
    %v1564 = vpack.c.b16 %v1172, %v1168
    %v1565 = vpack.c.b16 %v1177, %v1173
    %v1566 = vpack.c.b16 %v1178, %v1174
    %v1567 = vpack.c.b16 %v1179, %v1175
    %v1568 = vpack.c.b16 %v1180, %v1176
    %v1569 = vpack.c.b16 %v1185, %v1181
    %v1570 = vpack.c.b16 %v1186, %v1182
    %v1571 = vpack.c.b16 %v1187, %v1183
    %v1572 = vpack.c.b16 %v1188, %v1184
    %v1573 = vpack.c.b16 %v1193, %v1189
    %v1574 = vpack.c.b16 %v1194, %v1190
    %v1575 = vpack.c.b16 %v1195, %v1191
    %v1576 = vpack.c.b16 %v1196, %v1192
    %v1577 = vpack.c.b16 %v1201, %v1197
    %v1578 = vpack.c.b16 %v1202, %v1198
    %v1579 = vpack.c.b16 %v1203, %v1199
    %v1580 = vpack.c.b16 %v1204, %v1200
    %v1581 = vpack.c.b16 %v1209, %v1205
    %v1582 = vpack.c.b16 %v1210, %v1206
    %v1583 = vpack.c.b16 %v1211, %v1207
    %v1584 = vpack.c.b16 %v1212, %v1208
    %v1585 = vpack.c.b16 %v1217, %v1213
    %v1586 = vpack.c.b16 %v1218, %v1214
    %v1587 = vpack.c.b16 %v1219, %v1215
    %v1588 = vpack.c.b16 %v1220, %v1216
    %v1589 = vpack.c.b16 %v1225, %v1221
    %v1590 = vpack.c.b16 %v1226, %v1222
    %v1591 = vpack.c.b16 %v1227, %v1223
    %v1592 = vpack.c.b16 %v1228, %v1224
    %v1593 = vpack.c.b16 %v1233, %v1229
    %v1594 = vpack.c.b16 %v1234, %v1230
    %v1595 = vpack.c.b16 %v1235, %v1231
    %v1596 = vpack.c.b16 %v1236, %v1232
    %v1597 = vpack.c.b16 %v1241, %v1237
    %v1598 = vpack.c.b16 %v1242, %v1238
    %v1599 = vpack.c.b16 %v1243, %v1239
    %v1600 = vpack.c.b16 %v1244, %v1240
    %v1601 = vpack.c.b16 %v1249, %v1245
    %v1602 = vpack.c.b16 %v1250, %v1246
    %v1603 = vpack.c.b16 %v1251, %v1247
    %v1604 = vpack.c.b16 %v1252, %v1248
    %v1605 = vpack.c.b16 %v1257, %v1253
    %v1606 = vpack.c.b16 %v1258, %v1254
    %v1607 = vpack.c.b16 %v1259, %v1255
    %v1608 = vpack.c.b16 %v1260, %v1256
    %v1609 = vpack.c.b16 %v1265, %v1261
    %v1610 = vpack.c.b16 %v1266, %v1262
    %v1611 = vpack.c.b16 %v1267, %v1263
    %v1612 = vpack.c.b16 %v1268, %v1264
    %v1613 = vpack.c.b16 %v1273, %v1269
    %v1614 = vpack.c.b16 %v1274, %v1270
    %v1615 = vpack.c.b16 %v1275, %v1271
    %v1616 = vpack.c.b16 %v1276, %v1272
    %v1617 = vpack.c.b16 %v1281, %v1277
    %v1618 = vpack.c.b16 %v1282, %v1278
    %v1619 = vpack.c.b16 %v1283, %v1279
    %v1620 = vpack.c.b16 %v1284, %v1280
    %v1621 = vpack.c.b16 %v1289, %v1285
    %v1622 = vpack.c.b16 %v1290, %v1286
    %v1623 = vpack.c.b16 %v1291, %v1287
    %v1624 = vpack.c.b16 %v1292, %v1288
    %v1625 = vpack.c.b16 %v1297, %v1293
    %v1626 = vpack.c.b16 %v1298, %v1294
    %v1627 = vpack.c.b16 %v1299, %v1295
    %v1628 = vpack.c.b16 %v1300, %v1296
    %v1629 = vpack.c.b16 %v1305, %v1301
    %v1630 = vpack.c.b16 %v1306, %v1302
    %v1631 = vpack.c.b16 %v1307, %v1303
    %v1632 = vpack.c.b16 %v1308, %v1304
    %v1633 = vpack.c.b16 %v1313, %v1309
    %v1634 = vpack.c.b16 %v1314, %v1310
    %v1635 = vpack.c.b16 %v1315, %v1311
    %v1636 = vpack.c.b16 %v1316, %v1312
    %v1637 = vpack.c.b16 %v1321, %v1317
    %v1638 = vpack.c.b16 %v1322, %v1318
    %v1639 = vpack.c.b16 %v1323, %v1319
    %v1640 = vpack.c.b16 %v1324, %v1320
    %v1641 = vpack.c.b16 %v1329, %v1325
    %v1642 = vpack.c.b16 %v1330, %v1326
    %v1643 = vpack.c.b16 %v1331, %v1327
    %v1644 = vpack.c.b16 %v1332, %v1328
    %v1645 = vpack.c.b16 %v1337, %v1333
    %v1646 = vpack.c.b16 %v1338, %v1334
    %v1647 = vpack.c.b16 %v1339, %v1335
    %v1648 = vpack.c.b16 %v1340, %v1336
    %v1649 = vpack.c.b16 %v1345, %v1341
    %v1650 = vpack.c.b16 %v1346, %v1342
    %v1651 = vpack.c.b16 %v1347, %v1343
    %v1652 = vpack.c.b16 %v1348, %v1344
    %v1653 = vpack.c.b16 %v1353, %v1349
    %v1654 = vpack.c.b16 %v1354, %v1350
    %v1655 = vpack.c.b16 %v1355, %v1351
    %v1656 = vpack.c.b16 %v1356, %v1352
    %v1657 = vpack.c.b16 %v1361, %v1357
    %v1658 = vpack.c.b16 %v1362, %v1358
    %v1659 = vpack.c.b16 %v1363, %v1359
    %v1660 = vpack.c.b16 %v1364, %v1360
    %v1661 = vpack.c.b16 %v1369, %v1365
    %v1662 = vpack.c.b16 %v1370, %v1366
    %v1663 = vpack.c.b16 %v1371, %v1367
    %v1664 = vpack.c.b16 %v1372, %v1368
    %v1665 = vpack.c.b16 %v1377, %v1373
    %v1666 = vpack.c.b16 %v1378, %v1374
    %v1667 = vpack.c.b16 %v1379, %v1375
    %v1668 = vpack.c.b16 %v1380, %v1376
    %v1669 = vpack.c.b16 %v1385, %v1381
    %v1670 = vpack.c.b16 %v1386, %v1382
    %v1671 = vpack.c.b16 %v1387, %v1383
    %v1672 = vpack.c.b16 %v1388, %v1384
    %v1673 = vpack.c.b16 %v1393, %v1389
    %v1674 = vpack.c.b16 %v1394, %v1390
    %v1675 = vpack.c.b16 %v1395, %v1391
    %v1676 = vpack.c.b16 %v1396, %v1392
    %v1677 = vpack.c.b16 %v1401, %v1397
    %v1678 = vpack.c.b16 %v1402, %v1398
    %v1679 = vpack.c.b16 %v1403, %v1399
    %v1680 = vpack.c.b16 %v1404, %v1400
    %v1681 = vpack.c.b16 %v1409, %v1405
    %v1682 = vpack.c.b16 %v1410, %v1406
    %v1683 = vpack.c.b16 %v1411, %v1407
    %v1684 = vpack.c.b16 %v1412, %v1408
    %v1685 = vpack.c.b16 %v1417, %v1413
    %v1686 = vpack.c.b16 %v1418, %v1414
    %v1687 = vpack.c.b16 %v1419, %v1415
    %v1688 = vpack.c.b16 %v1420, %v1416
    %v1689 = vpack.c.b16 %v1425, %v1421
    %v1690 = vpack.c.b16 %v1426, %v1422
    %v1691 = vpack.c.b16 %v1427, %v1423
    %v1692 = vpack.c.b16 %v1428, %v1424
    %v1693 = vpack.c.b16 %v1433, %v1429
    %v1694 = vpack.c.b16 %v1434, %v1430
    %v1695 = vpack.c.b16 %v1435, %v1431
    %v1696 = vpack.c.b16 %v1436, %v1432
    %v1697 = vpack.c.b16 %v1441, %v1437
    %v1698 = vpack.c.b16 %v1442, %v1438
    %v1699 = vpack.c.b16 %v1443, %v1439
    %v1700 = vpack.c.b16 %v1444, %v1440
    %1957 = vmatprep.subr.bf16.mxu0 %v1474
    %1958 = vmatpush1.bf16.msra.mxu0 %v1473
    %1959 = vmatprep.subr.bf16.mxu0 %v1470
    %1960 = vmatpush1.bf16.msra.mxu0 %v1469
    %1961 = vmatprep.subr.bf16.mxu0 %v1466
    %1962 = vmatpush1.bf16.msra.mxu0 %v1465
    %1963 = vmatprep.subr.bf16.mxu0 %v1462
    %1964 = vmatpush1.bf16.msra.mxu0 %v1461
    %1965 = vmatprep.subr.bf16.mxu0 %v1458
    %1966 = vmatpush1.bf16.msra.mxu0 %v1457
    %1967 = vmatprep.subr.bf16.mxu0 %v1454
    %1968 = vmatpush1.bf16.msra.mxu0 %v1453
    %1969 = vmatprep.subr.bf16.mxu0 %v1450
    %1970 = vmatpush1.bf16.msra.mxu0 %v1449
    %1971 = vmatprep.subr.bf16.mxu0 %v1446
    %1972 = vmatpush1.bf16.msra.mxu0 %v1445
    %1973 = vmatprep.subr.bf16.mxu0 %v1506
    %1974 = vmatpush2.bf16.msra.mxu0 %v1505
    %1975 = vmatprep.subr.bf16.mxu0 %v1502
    %1976 = vmatpush2.bf16.msra.mxu0 %v1501
    %1977 = vmatprep.subr.bf16.mxu0 %v1498
    %1978 = vmatpush2.bf16.msra.mxu0 %v1497
    %1979 = vmatprep.subr.bf16.mxu0 %v1494
    %1980 = vmatpush2.bf16.msra.mxu0 %v1493
    %1981 = vmatprep.subr.bf16.mxu0 %v1490
    %1982 = vmatpush2.bf16.msra.mxu0 %v1489
    %1983 = vmatprep.subr.bf16.mxu0 %v1486
    %1984 = vmatpush2.bf16.msra.mxu0 %v1485
    %1985 = vmatprep.subr.bf16.mxu0 %v1482
    %1986 = vmatpush2.bf16.msra.mxu0 %v1481
    %1987 = vmatprep.subr.bf16.mxu0 %v1478
    %1988 = vmatpush2.bf16.msra.mxu0 %v1477
    %1989 = vmatprep.mubr.bf16.mxu0 %v649
    %1990 = vmatmul.mubr.bf16.gmra.mxu0 %v648
    %v1991 = vpop.f32.mrf.mxu0
    %v1992 = vadd.f32 %v660, %v1991
    %v1993 = vpop.f32.mrf.mxu0
    %v1994 = vadd.f32 %v664, %v1993
    %v1995 = vpop.f32.mrf.mxu0
    %v1996 = vpop.f32.mrf.mxu0
    %1997 = vdwg.mxu0
    %1998 = vmatprep.subr.bf16.mxu0 %v1538
    %1999 = vmatpush1.bf16.msra.mxu0 %v1537
    %2000 = vmatprep.subr.bf16.mxu0 %v1534
    %2001 = vmatpush1.bf16.msra.mxu0 %v1533
    %2002 = vmatprep.subr.bf16.mxu0 %v1530
    %2003 = vmatpush1.bf16.msra.mxu0 %v1529
    %2004 = vmatprep.subr.bf16.mxu0 %v1526
    %2005 = vmatpush1.bf16.msra.mxu0 %v1525
    %2006 = vmatprep.subr.bf16.mxu0 %v1522
    %2007 = vmatpush1.bf16.msra.mxu0 %v1521
    %2008 = vmatprep.subr.bf16.mxu0 %v1518
    %2009 = vmatpush1.bf16.msra.mxu0 %v1517
    %2010 = vmatprep.subr.bf16.mxu0 %v1514
    %2011 = vmatpush1.bf16.msra.mxu0 %v1513
    %2012 = vmatprep.subr.bf16.mxu0 %v1510
    %2013 = vmatpush1.bf16.msra.mxu0 %v1509
    %2014 = vmatprep.subr.bf16.mxu0 %v1570
    %2015 = vmatpush2.bf16.msra.mxu0 %v1569
    %2016 = vmatprep.subr.bf16.mxu0 %v1566
    %2017 = vmatpush2.bf16.msra.mxu0 %v1565
    %2018 = vmatprep.subr.bf16.mxu0 %v1562
    %2019 = vmatpush2.bf16.msra.mxu0 %v1561
    %2020 = vmatprep.subr.bf16.mxu0 %v1558
    %2021 = vmatpush2.bf16.msra.mxu0 %v1557
    %2022 = vmatprep.subr.bf16.mxu0 %v1554
    %2023 = vmatpush2.bf16.msra.mxu0 %v1553
    %2024 = vmatprep.subr.bf16.mxu0 %v1550
    %2025 = vmatpush2.bf16.msra.mxu0 %v1549
    %2026 = vmatprep.subr.bf16.mxu0 %v1546
    %2027 = vmatpush2.bf16.msra.mxu0 %v1545
    %2028 = vmatprep.subr.bf16.mxu0 %v1542
    %2029 = vmatpush2.bf16.msra.mxu0 %v1541
    %2030 = vmatprep.mubr.bf16.mxu0 %v651
    %2031 = vmatmul.mubr.bf16.gmra.mxu0 %v650
    %v2032 = vpop.f32.mrf.mxu0
    %v2033 = vadd.f32 %v1992, %v2032
    %v2034 = vpop.f32.mrf.mxu0
    %v2035 = vadd.f32 %v1994, %v2034
    %v2036 = vpop.f32.mrf.mxu0
    %v2037 = vpop.f32.mrf.mxu0
    %2038 = vdwg.mxu0
    %2039 = vmatprep.subr.bf16.mxu0 %v1602
    %2040 = vmatpush1.bf16.msra.mxu0 %v1601
    %2041 = vmatprep.subr.bf16.mxu0 %v1598
    %2042 = vmatpush1.bf16.msra.mxu0 %v1597
    %2043 = vmatprep.subr.bf16.mxu0 %v1594
    %2044 = vmatpush1.bf16.msra.mxu0 %v1593
    %2045 = vmatprep.subr.bf16.mxu0 %v1590
    %2046 = vmatpush1.bf16.msra.mxu0 %v1589
    %2047 = vmatprep.subr.bf16.mxu0 %v1586
    %2048 = vmatpush1.bf16.msra.mxu0 %v1585
    %2049 = vmatprep.subr.bf16.mxu0 %v1582
    %2050 = vmatpush1.bf16.msra.mxu0 %v1581
    %2051 = vmatprep.subr.bf16.mxu0 %v1578
    %2052 = vmatpush1.bf16.msra.mxu0 %v1577
    %2053 = vmatprep.subr.bf16.mxu0 %v1574
    %2054 = vmatpush1.bf16.msra.mxu0 %v1573
    %2055 = vmatprep.subr.bf16.mxu0 %v1634
    %2056 = vmatpush2.bf16.msra.mxu0 %v1633
    %2057 = vmatprep.subr.bf16.mxu0 %v1630
    %2058 = vmatpush2.bf16.msra.mxu0 %v1629
    %2059 = vmatprep.subr.bf16.mxu0 %v1626
    %2060 = vmatpush2.bf16.msra.mxu0 %v1625
    %2061 = vmatprep.subr.bf16.mxu0 %v1622
    %2062 = vmatpush2.bf16.msra.mxu0 %v1621
    %2063 = vmatprep.subr.bf16.mxu0 %v1618
    %2064 = vmatpush2.bf16.msra.mxu0 %v1617
    %2065 = vmatprep.subr.bf16.mxu0 %v1614
    %2066 = vmatpush2.bf16.msra.mxu0 %v1613
    %2067 = vmatprep.subr.bf16.mxu0 %v1610
    %2068 = vmatpush2.bf16.msra.mxu0 %v1609
    %2069 = vmatprep.subr.bf16.mxu0 %v1606
    %2070 = vmatpush2.bf16.msra.mxu0 %v1605
    %2071 = vmatprep.mubr.bf16.mxu0 %v653
    %2072 = vmatmul.mubr.bf16.gmra.mxu0 %v652
    %v2073 = vpop.f32.mrf.mxu0
    %v2074 = vadd.f32 %v2033, %v2073
    %v2075 = vpop.f32.mrf.mxu0
    %v2076 = vadd.f32 %v2035, %v2075
    %v2077 = vpop.f32.mrf.mxu0
    %v2078 = vpop.f32.mrf.mxu0
    %2079 = vdwg.mxu0
    %2080 = vmatprep.subr.bf16.mxu0 %v1666
    %2081 = vmatpush1.bf16.msra.mxu0 %v1665
    %2082 = vmatprep.subr.bf16.mxu0 %v1662
    %2083 = vmatpush1.bf16.msra.mxu0 %v1661
    %2084 = vmatprep.subr.bf16.mxu0 %v1658
    %2085 = vmatpush1.bf16.msra.mxu0 %v1657
    %2086 = vmatprep.subr.bf16.mxu0 %v1654
    %2087 = vmatpush1.bf16.msra.mxu0 %v1653
    %2088 = vmatprep.subr.bf16.mxu0 %v1650
    %2089 = vmatpush1.bf16.msra.mxu0 %v1649
    %2090 = vmatprep.subr.bf16.mxu0 %v1646
    %2091 = vmatpush1.bf16.msra.mxu0 %v1645
    %2092 = vmatprep.subr.bf16.mxu0 %v1642
    %2093 = vmatpush1.bf16.msra.mxu0 %v1641
    %2094 = vmatprep.subr.bf16.mxu0 %v1638
    %2095 = vmatpush1.bf16.msra.mxu0 %v1637
    %2096 = vmatprep.subr.bf16.mxu0 %v1698
    %2097 = vmatpush2.bf16.msra.mxu0 %v1697
    %2098 = vmatprep.subr.bf16.mxu0 %v1694
    %2099 = vmatpush2.bf16.msra.mxu0 %v1693
    %2100 = vmatprep.subr.bf16.mxu0 %v1690
    %2101 = vmatpush2.bf16.msra.mxu0 %v1689
    %2102 = vmatprep.subr.bf16.mxu0 %v1686
    %2103 = vmatpush2.bf16.msra.mxu0 %v1685
    %2104 = vmatprep.subr.bf16.mxu0 %v1682
    %2105 = vmatpush2.bf16.msra.mxu0 %v1681
    %2106 = vmatprep.subr.bf16.mxu0 %v1678
    %2107 = vmatpush2.bf16.msra.mxu0 %v1677
    %2108 = vmatprep.subr.bf16.mxu0 %v1674
    %2109 = vmatpush2.bf16.msra.mxu0 %v1673
    %2110 = vmatprep.subr.bf16.mxu0 %v1670
    %2111 = vmatpush2.bf16.msra.mxu0 %v1669
    %2112 = vmatprep.mubr.bf16.mxu0 %v655
    %2113 = vmatmul.mubr.bf16.gmra.mxu0 %v654
    %v2114 = vpop.f32.mrf.mxu0
    %v2115 = vadd.f32 %v2074, %v2114
    %v2116 = vpop.f32.mrf.mxu0
    %v2117 = vadd.f32 %v2076, %v2116
    %v2118 = vpop.f32.mrf.mxu0
    %v2119 = vpop.f32.mrf.mxu0
    %2120 = vdwg.mxu0
    %2121 = vmatprep.subr.bf16.mxu0 %v1476
    %2122 = vmatpush1.bf16.msra.mxu0 %v1475
    %2123 = vmatprep.subr.bf16.mxu0 %v1472
    %2124 = vmatpush1.bf16.msra.mxu0 %v1471
    %2125 = vmatprep.subr.bf16.mxu0 %v1468
    %2126 = vmatpush1.bf16.msra.mxu0 %v1467
    %2127 = vmatprep.subr.bf16.mxu0 %v1464
    %2128 = vmatpush1.bf16.msra.mxu0 %v1463
    %2129 = vmatprep.subr.bf16.mxu0 %v1460
    %2130 = vmatpush1.bf16.msra.mxu0 %v1459
    %2131 = vmatprep.subr.bf16.mxu0 %v1456
    %2132 = vmatpush1.bf16.msra.mxu0 %v1455
    %2133 = vmatprep.subr.bf16.mxu0 %v1452
    %2134 = vmatpush1.bf16.msra.mxu0 %v1451
    %2135 = vmatprep.subr.bf16.mxu0 %v1448
    %2136 = vmatpush1.bf16.msra.mxu0 %v1447
    %2137 = vmatprep.subr.bf16.mxu0 %v1508
    %2138 = vmatpush2.bf16.msra.mxu0 %v1507
    %2139 = vmatprep.subr.bf16.mxu0 %v1504
    %2140 = vmatpush2.bf16.msra.mxu0 %v1503
    %2141 = vmatprep.subr.bf16.mxu0 %v1500
    %2142 = vmatpush2.bf16.msra.mxu0 %v1499
    %2143 = vmatprep.subr.bf16.mxu0 %v1496
    %2144 = vmatpush2.bf16.msra.mxu0 %v1495
    %2145 = vmatprep.subr.bf16.mxu0 %v1492
    %2146 = vmatpush2.bf16.msra.mxu0 %v1491
    %2147 = vmatprep.subr.bf16.mxu0 %v1488
    %2148 = vmatpush2.bf16.msra.mxu0 %v1487
    %2149 = vmatprep.subr.bf16.mxu0 %v1484
    %2150 = vmatpush2.bf16.msra.mxu0 %v1483
    %2151 = vmatprep.subr.bf16.mxu0 %v1480
    %2152 = vmatpush2.bf16.msra.mxu0 %v1479
    %2153 = vmatprep.mubr.bf16.mxu0 %v649
    %2154 = vmatmul.mubr.bf16.gmra.mxu0 %v648
    %v2155 = vpop.f32.mrf.mxu0
    %v2156 = vadd.f32 %v668, %v2155
    %v2157 = vpop.f32.mrf.mxu0
    %v2158 = vadd.f32 %v672, %v2157
    %v2159 = vpop.f32.mrf.mxu0
    %v2160 = vpop.f32.mrf.mxu0
    %2161 = vdwg.mxu0
    %2162 = vmatprep.subr.bf16.mxu0 %v1540
    %2163 = vmatpush1.bf16.msra.mxu0 %v1539
    %2164 = vmatprep.subr.bf16.mxu0 %v1536
    %2165 = vmatpush1.bf16.msra.mxu0 %v1535
    %2166 = vmatprep.subr.bf16.mxu0 %v1532
    %2167 = vmatpush1.bf16.msra.mxu0 %v1531
    %2168 = vmatprep.subr.bf16.mxu0 %v1528
    %2169 = vmatpush1.bf16.msra.mxu0 %v1527
    %2170 = vmatprep.subr.bf16.mxu0 %v1524
    %2171 = vmatpush1.bf16.msra.mxu0 %v1523
    %2172 = vmatprep.subr.bf16.mxu0 %v1520
    %2173 = vmatpush1.bf16.msra.mxu0 %v1519
    %2174 = vmatprep.subr.bf16.mxu0 %v1516
    %2175 = vmatpush1.bf16.msra.mxu0 %v1515
    %2176 = vmatprep.subr.bf16.mxu0 %v1512
    %2177 = vmatpush1.bf16.msra.mxu0 %v1511
    %2178 = vmatprep.subr.bf16.mxu0 %v1572
    %2179 = vmatpush2.bf16.msra.mxu0 %v1571
    %2180 = vmatprep.subr.bf16.mxu0 %v1568
    %2181 = vmatpush2.bf16.msra.mxu0 %v1567
    %2182 = vmatprep.subr.bf16.mxu0 %v1564
    %2183 = vmatpush2.bf16.msra.mxu0 %v1563
    %2184 = vmatprep.subr.bf16.mxu0 %v1560
    %2185 = vmatpush2.bf16.msra.mxu0 %v1559
    %2186 = vmatprep.subr.bf16.mxu0 %v1556
    %2187 = vmatpush2.bf16.msra.mxu0 %v1555
    %2188 = vmatprep.subr.bf16.mxu0 %v1552
    %2189 = vmatpush2.bf16.msra.mxu0 %v1551
    %2190 = vmatprep.subr.bf16.mxu0 %v1548
    %2191 = vmatpush2.bf16.msra.mxu0 %v1547
    %2192 = vmatprep.subr.bf16.mxu0 %v1544
    %2193 = vmatpush2.bf16.msra.mxu0 %v1543
    %2194 = vmatprep.mubr.bf16.mxu0 %v651
    %2195 = vmatmul.mubr.bf16.gmra.mxu0 %v650
    %v2196 = vpop.f32.mrf.mxu0
    %v2197 = vadd.f32 %v2156, %v2196
    %v2198 = vpop.f32.mrf.mxu0
    %v2199 = vadd.f32 %v2158, %v2198
    %v2200 = vpop.f32.mrf.mxu0
    %v2201 = vpop.f32.mrf.mxu0
    %2202 = vdwg.mxu0
    %2203 = vmatprep.subr.bf16.mxu0 %v1604
    %2204 = vmatpush1.bf16.msra.mxu0 %v1603
    %2205 = vmatprep.subr.bf16.mxu0 %v1600
    %2206 = vmatpush1.bf16.msra.mxu0 %v1599
    %2207 = vmatprep.subr.bf16.mxu0 %v1596
    %2208 = vmatpush1.bf16.msra.mxu0 %v1595
    %2209 = vmatprep.subr.bf16.mxu0 %v1592
    %2210 = vmatpush1.bf16.msra.mxu0 %v1591
    %2211 = vmatprep.subr.bf16.mxu0 %v1588
    %2212 = vmatpush1.bf16.msra.mxu0 %v1587
    %2213 = vmatprep.subr.bf16.mxu0 %v1584
    %2214 = vmatpush1.bf16.msra.mxu0 %v1583
    %2215 = vmatprep.subr.bf16.mxu0 %v1580
    %2216 = vmatpush1.bf16.msra.mxu0 %v1579
    %2217 = vmatprep.subr.bf16.mxu0 %v1576
    %2218 = vmatpush1.bf16.msra.mxu0 %v1575
    %2219 = vmatprep.subr.bf16.mxu0 %v1636
    %2220 = vmatpush2.bf16.msra.mxu0 %v1635
    %2221 = vmatprep.subr.bf16.mxu0 %v1632
    %2222 = vmatpush2.bf16.msra.mxu0 %v1631
    %2223 = vmatprep.subr.bf16.mxu0 %v1628
    %2224 = vmatpush2.bf16.msra.mxu0 %v1627
    %2225 = vmatprep.subr.bf16.mxu0 %v1624
    %2226 = vmatpush2.bf16.msra.mxu0 %v1623
    %2227 = vmatprep.subr.bf16.mxu0 %v1620
    %2228 = vmatpush2.bf16.msra.mxu0 %v1619
    %2229 = vmatprep.subr.bf16.mxu0 %v1616
    %2230 = vmatpush2.bf16.msra.mxu0 %v1615
    %2231 = vmatprep.subr.bf16.mxu0 %v1612
    %2232 = vmatpush2.bf16.msra.mxu0 %v1611
    %2233 = vmatprep.subr.bf16.mxu0 %v1608
    %2234 = vmatpush2.bf16.msra.mxu0 %v1607
    %2235 = vmatprep.mubr.bf16.mxu0 %v653
    %2236 = vmatmul.mubr.bf16.gmra.mxu0 %v652
    %v2237 = vpop.f32.mrf.mxu0
    %v2238 = vadd.f32 %v2197, %v2237
    %v2239 = vpop.f32.mrf.mxu0
    %v2240 = vadd.f32 %v2199, %v2239
    %v2241 = vpop.f32.mrf.mxu0
    %v2242 = vpop.f32.mrf.mxu0
    %2243 = vdwg.mxu0
    %2244 = vmatprep.subr.bf16.mxu0 %v1668
    %2245 = vmatpush1.bf16.msra.mxu0 %v1667
    %2246 = vmatprep.subr.bf16.mxu0 %v1664
    %2247 = vmatpush1.bf16.msra.mxu0 %v1663
    %2248 = vmatprep.subr.bf16.mxu0 %v1660
    %2249 = vmatpush1.bf16.msra.mxu0 %v1659
    %2250 = vmatprep.subr.bf16.mxu0 %v1656
    %2251 = vmatpush1.bf16.msra.mxu0 %v1655
    %2252 = vmatprep.subr.bf16.mxu0 %v1652
    %2253 = vmatpush1.bf16.msra.mxu0 %v1651
    %2254 = vmatprep.subr.bf16.mxu0 %v1648
    %2255 = vmatpush1.bf16.msra.mxu0 %v1647
    %2256 = vmatprep.subr.bf16.mxu0 %v1644
    %2257 = vmatpush1.bf16.msra.mxu0 %v1643
    %2258 = vmatprep.subr.bf16.mxu0 %v1640
    %2259 = vmatpush1.bf16.msra.mxu0 %v1639
    %2260 = vmatprep.subr.bf16.mxu0 %v1700
    %2261 = vmatpush2.bf16.msra.mxu0 %v1699
    %2262 = vmatprep.subr.bf16.mxu0 %v1696
    %2263 = vmatpush2.bf16.msra.mxu0 %v1695
    %2264 = vmatprep.subr.bf16.mxu0 %v1692
    %2265 = vmatpush2.bf16.msra.mxu0 %v1691
    %2266 = vmatprep.subr.bf16.mxu0 %v1688
    %2267 = vmatpush2.bf16.msra.mxu0 %v1687
    %2268 = vmatprep.subr.bf16.mxu0 %v1684
    %2269 = vmatpush2.bf16.msra.mxu0 %v1683
    %2270 = vmatprep.subr.bf16.mxu0 %v1680
    %2271 = vmatpush2.bf16.msra.mxu0 %v1679
    %2272 = vmatprep.subr.bf16.mxu0 %v1676
    %2273 = vmatpush2.bf16.msra.mxu0 %v1675
    %2274 = vmatprep.subr.bf16.mxu0 %v1672
    %2275 = vmatpush2.bf16.msra.mxu0 %v1671
    %2276 = vmatprep.mubr.bf16.mxu0 %v655
    %2277 = vmatmul.mubr.bf16.gmra.mxu0 %v654
    %v2278 = vpop.f32.mrf.mxu0
    %v2279 = vadd.f32 %v2238, %v2278
    %v2280 = vpop.f32.mrf.mxu0
    %v2281 = vadd.f32 %v2240, %v2280
    %v2282 = vpop.f32.mrf.mxu0
    %v2283 = vpop.f32.mrf.mxu0
    %2284 = vdwg.mxu0
    %v2285 = vmax.f32 %v2115, 0.0
    %v2286 = vmax.f32 %v2117, 0.0
    %v2287 = vmax.f32 %v2279, 0.0
    %v2288 = vmax.f32 %v2281, 0.0
    %v2289 = vpack.c.bf16 %v2285, %v2285
    %v2290 = vpack.c.bf16 %v2286, %v2286
    %v2291 = vpack.c.bf16 %v2287, %v2287
    %v2292 = vpack.c.bf16 %v2288, %v2288
    %v2294 = vlaneseq
    %v2295 = vshrl.u32 %v2294, 7
    %v2296 = vsub.s32 0, %v2295
    %v2297 = vrot.slane %v372, %v2296
    %v2363 = vunpack.c.l.b16 %v308
    %v2364 = vunpack.c.l.b16 %v309
    %v2365 = vunpack.c.l.b16 %v310
    %v2366 = vunpack.c.l.b16 %v311
    %v2367 = vunpack.c.l.b16 %v312
    %v2368 = vunpack.c.l.b16 %v313
    %v2369 = vunpack.c.l.b16 %v314
    %v2370 = vunpack.c.l.b16 %v315
    %v2371 = vunpack.c.l.b16 %v316
    %v2372 = vunpack.c.l.b16 %v317
    %v2373 = vunpack.c.l.b16 %v318
    %v2374 = vunpack.c.l.b16 %v319
    %v2375 = vunpack.c.l.b16 %v320
    %v2376 = vunpack.c.l.b16 %v321
    %v2377 = vunpack.c.l.b16 %v322
    %v2378 = vunpack.c.l.b16 %v323
    %v2379 = vunpack.c.l.b16 %v324
    %v2380 = vunpack.c.l.b16 %v325
    %v2381 = vunpack.c.l.b16 %v326
    %v2382 = vunpack.c.l.b16 %v327
    %v2383 = vunpack.c.l.b16 %v328
    %v2384 = vunpack.c.l.b16 %v329
    %v2385 = vunpack.c.l.b16 %v330
    %v2386 = vunpack.c.l.b16 %v331
    %v2387 = vunpack.c.l.b16 %v332
    %v2388 = vunpack.c.l.b16 %v333
    %v2389 = vunpack.c.l.b16 %v334
    %v2390 = vunpack.c.l.b16 %v335
    %v2391 = vunpack.c.l.b16 %v336
    %v2392 = vunpack.c.l.b16 %v337
    %v2393 = vunpack.c.l.b16 %v338
    %v2394 = vunpack.c.l.b16 %v339
    %v2395 = vunpack.c.l.b16 %v340
    %v2396 = vunpack.c.l.b16 %v341
    %v2397 = vunpack.c.l.b16 %v342
    %v2398 = vunpack.c.l.b16 %v343
    %v2399 = vunpack.c.l.b16 %v344
    %v2400 = vunpack.c.l.b16 %v345
    %v2401 = vunpack.c.l.b16 %v346
    %v2402 = vunpack.c.l.b16 %v347
    %v2403 = vunpack.c.l.b16 %v348
    %v2404 = vunpack.c.l.b16 %v349
    %v2405 = vunpack.c.l.b16 %v350
    %v2406 = vunpack.c.l.b16 %v351
    %v2407 = vunpack.c.l.b16 %v352
    %v2408 = vunpack.c.l.b16 %v353
    %v2409 = vunpack.c.l.b16 %v354
    %v2410 = vunpack.c.l.b16 %v355
    %v2411 = vunpack.c.l.b16 %v356
    %v2412 = vunpack.c.l.b16 %v357
    %v2413 = vunpack.c.l.b16 %v358
    %v2414 = vunpack.c.l.b16 %v359
    %v2415 = vunpack.c.l.b16 %v360
    %v2416 = vunpack.c.l.b16 %v361
    %v2417 = vunpack.c.l.b16 %v362
    %v2418 = vunpack.c.l.b16 %v363
    %v2419 = vunpack.c.l.b16 %v364
    %v2420 = vunpack.c.l.b16 %v365
    %v2421 = vunpack.c.l.b16 %v366
    %v2422 = vunpack.c.l.b16 %v367
    %v2423 = vunpack.c.l.b16 %v368
    %v2424 = vunpack.c.l.b16 %v369
    %v2425 = vunpack.c.l.b16 %v370
    %v2426 = vunpack.c.l.b16 %v371
    %v2427 = vpack.c.b16 %v2364, %v2363
    %v2428 = vpack.c.b16 %v2366, %v2365
    %v2429 = vpack.c.b16 %v2368, %v2367
    %v2430 = vpack.c.b16 %v2370, %v2369
    %v2431 = vpack.c.b16 %v2372, %v2371
    %v2432 = vpack.c.b16 %v2374, %v2373
    %v2433 = vpack.c.b16 %v2376, %v2375
    %v2434 = vpack.c.b16 %v2378, %v2377
    %v2435 = vpack.c.b16 %v2380, %v2379
    %v2436 = vpack.c.b16 %v2382, %v2381
    %v2437 = vpack.c.b16 %v2384, %v2383
    %v2438 = vpack.c.b16 %v2386, %v2385
    %v2439 = vpack.c.b16 %v2388, %v2387
    %v2440 = vpack.c.b16 %v2390, %v2389
    %v2441 = vpack.c.b16 %v2392, %v2391
    %v2442 = vpack.c.b16 %v2394, %v2393
    %v2443 = vpack.c.b16 %v2396, %v2395
    %v2444 = vpack.c.b16 %v2398, %v2397
    %v2445 = vpack.c.b16 %v2400, %v2399
    %v2446 = vpack.c.b16 %v2402, %v2401
    %v2447 = vpack.c.b16 %v2404, %v2403
    %v2448 = vpack.c.b16 %v2406, %v2405
    %v2449 = vpack.c.b16 %v2408, %v2407
    %v2450 = vpack.c.b16 %v2410, %v2409
    %v2451 = vpack.c.b16 %v2412, %v2411
    %v2452 = vpack.c.b16 %v2414, %v2413
    %v2453 = vpack.c.b16 %v2416, %v2415
    %v2454 = vpack.c.b16 %v2418, %v2417
    %v2455 = vpack.c.b16 %v2420, %v2419
    %v2456 = vpack.c.b16 %v2422, %v2421
    %v2457 = vpack.c.b16 %v2424, %v2423
    %v2458 = vpack.c.b16 %v2426, %v2425
    %2491 = vmatprep.subr.bf16.mxu0 0
    %2492 = vmatpush1.bf16.msra.mxu0 %v2434
    %2493 = vmatprep.subr.bf16.mxu0 0
    %2494 = vmatpush1.bf16.msra.mxu0 %v2433
    %2495 = vmatprep.subr.bf16.mxu0 0
    %2496 = vmatpush1.bf16.msra.mxu0 %v2432
    %2497 = vmatprep.subr.bf16.mxu0 0
    %2498 = vmatpush1.bf16.msra.mxu0 %v2431
    %2499 = vmatprep.subr.bf16.mxu0 0
    %2500 = vmatpush1.bf16.msra.mxu0 %v2430
    %2501 = vmatprep.subr.bf16.mxu0 0
    %2502 = vmatpush1.bf16.msra.mxu0 %v2429
    %2503 = vmatprep.subr.bf16.mxu0 0
    %2504 = vmatpush1.bf16.msra.mxu0 %v2428
    %2505 = vmatprep.subr.bf16.mxu0 0
    %2506 = vmatpush1.bf16.msra.mxu0 %v2427
    %2507 = vmatprep.subr.bf16.mxu0 0
    %2508 = vmatpush2.bf16.msra.mxu0 %v2442
    %2509 = vmatprep.subr.bf16.mxu0 0
    %2510 = vmatpush2.bf16.msra.mxu0 %v2441
    %2511 = vmatprep.subr.bf16.mxu0 0
    %2512 = vmatpush2.bf16.msra.mxu0 %v2440
    %2513 = vmatprep.subr.bf16.mxu0 0
    %2514 = vmatpush2.bf16.msra.mxu0 %v2439
    %2515 = vmatprep.subr.bf16.mxu0 0
    %2516 = vmatpush2.bf16.msra.mxu0 %v2438
    %2517 = vmatprep.subr.bf16.mxu0 0
    %2518 = vmatpush2.bf16.msra.mxu0 %v2437
    %2519 = vmatprep.subr.bf16.mxu0 0
    %2520 = vmatpush2.bf16.msra.mxu0 %v2436
    %2521 = vmatprep.subr.bf16.mxu0 0
    %2522 = vmatpush2.bf16.msra.mxu0 %v2435
    %2523 = vmatprep.mubr.bf16.mxu0 %v2290
    %2524 = vmatmul.mubr.bf16.gmra.mxu0 %v2289
    %v2525 = vpop.f32.mrf.mxu0
    %v2526 = vadd.f32 %v2297, %v2525
    %v2527 = vpop.f32.mrf.mxu0
    %v2528 = vpop.f32.mrf.mxu0
    %v2529 = vpop.f32.mrf.mxu0
    %2530 = vdwg.mxu0
    %2531 = vmatprep.subr.bf16.mxu0 0
    %2532 = vmatpush1.bf16.msra.mxu0 %v2450
    %2533 = vmatprep.subr.bf16.mxu0 0
    %2534 = vmatpush1.bf16.msra.mxu0 %v2449
    %2535 = vmatprep.subr.bf16.mxu0 0
    %2536 = vmatpush1.bf16.msra.mxu0 %v2448
    %2537 = vmatprep.subr.bf16.mxu0 0
    %2538 = vmatpush1.bf16.msra.mxu0 %v2447
    %2539 = vmatprep.subr.bf16.mxu0 0
    %2540 = vmatpush1.bf16.msra.mxu0 %v2446
    %2541 = vmatprep.subr.bf16.mxu0 0
    %2542 = vmatpush1.bf16.msra.mxu0 %v2445
    %2543 = vmatprep.subr.bf16.mxu0 0
    %2544 = vmatpush1.bf16.msra.mxu0 %v2444
    %2545 = vmatprep.subr.bf16.mxu0 0
    %2546 = vmatpush1.bf16.msra.mxu0 %v2443
    %2547 = vmatprep.subr.bf16.mxu0 0
    %2548 = vmatpush2.bf16.msra.mxu0 %v2458
    %2549 = vmatprep.subr.bf16.mxu0 0
    %2550 = vmatpush2.bf16.msra.mxu0 %v2457
    %2551 = vmatprep.subr.bf16.mxu0 0
    %2552 = vmatpush2.bf16.msra.mxu0 %v2456
    %2553 = vmatprep.subr.bf16.mxu0 0
    %2554 = vmatpush2.bf16.msra.mxu0 %v2455
    %2555 = vmatprep.subr.bf16.mxu0 0
    %2556 = vmatpush2.bf16.msra.mxu0 %v2454
    %2557 = vmatprep.subr.bf16.mxu0 0
    %2558 = vmatpush2.bf16.msra.mxu0 %v2453
    %2559 = vmatprep.subr.bf16.mxu0 0
    %2560 = vmatpush2.bf16.msra.mxu0 %v2452
    %2561 = vmatprep.subr.bf16.mxu0 0
    %2562 = vmatpush2.bf16.msra.mxu0 %v2451
    %2563 = vmatprep.mubr.bf16.mxu0 %v2292
    %2564 = vmatmul.mubr.bf16.gmra.mxu0 %v2291
    %v2565 = vpop.f32.mrf.mxu0
    %v2566 = vadd.f32 %v2526, %v2565
    %v2567 = vpop.f32.mrf.mxu0
    %v2568 = vpop.f32.mrf.mxu0
    %v2569 = vpop.f32.mrf.mxu0
    %2570 = vdwg.mxu0
    %v2571 = vlaneseq
    %v2572 = vand.u32 %v2571, 127
    %vm2573 = vcmp.lt.s32.totalorder %v2572, 3
    %v2574 = vsel %vm2573, %v2566, 0.0
    %vm2575 = vcmp.eq.s32.totalorder %v2572, 3
    %v2576 = vsel %vm2575, %v2566, 0.0
    %vm2577 = vcmask 31744
    %v2578 = vsel %vm2577, %v2576, 0.0
    %2579 = vadd.xlane.f32.xlu0 %v2578
    %v2580 = vpop.xlane.xlu0 %2579
    %v2581 = vsel %vm2577, %v2574, 0.0
    %2582 = vadd.xlane.f32.xlu0 %v2581
    %v2583 = vpop.xlane.xlu0 %2582
    %v2584 = vrot.slane %v2583, 4
    %v2585 = vadd.f32 %v2583, %v2584
    %v2586 = vrot.slane %v2585, 2
    %v2587 = vadd.f32 %v2585, %v2586
    %v2588 = vrot.slane %v2587, 1
    %v2589 = vadd.f32 %v2587, %v2588
    %s2590 = vtos %v2589
    %s2591 = smul.f32 %s2590, 0.041666668
    %v2592 = vadd.f32 %v2574, %v2580
    %v2593 = vstv %s2591
    %v2594 = vsub.f32 %v2592, %v2593
    %vm2595 = vcmask 23552
    %2596 = vst.msk [vmem:[%s7] sm:$0xff] %vm2595, %v2594
    // Predicated region
    $region34: #{tpu_custom_call.1} parent=1 // pred_check
      _
    $region35: #{tpu_custom_call.1} parent=1 // pred_check_branch
      %2598 = sbr.rel (0) target = $region37
    $region36: #{tpu_custom_call.1} parent=1 // pred_region
      _
    $region37: #{tpu_custom_call.1} parent=1 // pred_fallthru
      _
    // Predicated region
    $region38: #{tpu_custom_call.1} parent=1 // pred_check
      _
    $region39: #{tpu_custom_call.1} parent=1 // pred_check_branch
      %2600 = sbr.rel (0) target = $region41
    $region40: #{tpu_custom_call.1} parent=1 // pred_region
      _
    $region41: #{tpu_custom_call.1} parent=1 // pred_fallthru
      _
    %2601 = vsyncpa [#allocation3], 1

</llo_original>
